<compile_context>
chip_gen: v7x
topology: tpu7x:2x2x1
jax: 0.10.0
libtpu: 0.0.40
codegen_flags: <defaults>
</compile_context>

<pallas_src>
import jax
import jax.numpy as jnp
import numpy as np
from jax.experimental import pallas as pl
from jax.experimental.pallas import tpu as pltpu


# ----------------------------- fused kernel -----------------------------

def make_fused_embedding_kernel(W1o, W1f, NP2, Wc3, NP3, H2f, W2f, H3, W3):
    """Builds the fused 4-block kernel (one image per grid step).

    Activations never leave VMEM between blocks; only block1 patches are read
    from HBM and only the final (H3*W3, C) embedding is written back.
    """
    f32 = jnp.float32

    def conv_bias_relu(patches, w_ref, b_ref):
        # (N, K) @ (K, C) on the MXU; BN scale folded into w, BN shift + conv
        # bias folded into b; ReLU on the VPU.
        acc = jnp.dot(patches, w_ref[...], preferred_element_type=f32)
        return jnp.maximum(acc + b_ref[...], 0.0)

    def pool2x2(y, row_stride, sel_ref):
        # y: row-major canvas (rows, C).  VPU max over the 2x2 window
        # {p, p+1, p+row_stride, p+row_stride+1}, then an exact one-hot
        # selection matmul picks the (even-h, even-w) window anchors.
        a = jnp.maximum(y[:-1, :], y[1:, :])
        b = jnp.maximum(a[:-row_stride, :], a[row_stride:, :])
        return jnp.dot(sel_ref[...], b, preferred_element_type=f32)

    def canvas_patches(x, row_stride, n_out):
        # In-kernel im2col: the 9 taps of a 3x3 conv over a row-major canvas
        # are shifted row slices; lane-concat -> (n_out, 9*C), (dy, dx, c)
        # tap order (matches w.reshape(9*C, Cout)).
        taps = [x[dy * row_stride + dx: dy * row_stride + dx + n_out, :]
                for dy in range(3) for dx in range(3)]
        return jnp.concatenate(taps, axis=1)

    def zero_pad_canvas(x, Hin, Win):
        # (Hin*Win, C) -> ((Hin+2)*(Win+2), C) with a 1-pixel zero border.
        C = x.shape[-1]
        zrow = jnp.zeros((Win + 2, C), f32)
        zcol = jnp.zeros((1, C), f32)
        rows = [zrow]
        for h in range(Hin):
            rows.append(jnp.concatenate(
                [zcol, x[h * Win:(h + 1) * Win, :], zcol], axis=0))
        rows.append(zrow)
        return jnp.concatenate(rows, axis=0)

    def crop_valid(y):
        # keep the W3-wide valid prefix of each of the H3 canvas rows
        return jnp.concatenate(
            [y[h * Wc3: h * Wc3 + W3, :] for h in range(H3)], axis=0)

    def kernel(p1_ref, w1_ref, b1_ref, w2_ref, b2_ref, w3_ref, b3_ref,
               w4_ref, b4_ref, s1_ref, s2_ref, o_ref):
        # ---- block1: conv (wrapper-side im2col) + BN + ReLU + 2x2 max-pool
        y1 = conv_bias_relu(p1_ref[0], w1_ref, b1_ref)      # (H1o*W1o, C)
        x2 = pool2x2(y1, W1o, s1_ref)                       # (H1f*W1f, C)

        # ---- block2: in-kernel im2col over the pooled canvas + conv + pool
        y2 = conv_bias_relu(canvas_patches(x2, W1f, NP2), w2_ref, b2_ref)
        x3 = pool2x2(y2, W1f, s2_ref)                       # (H2f*W2f, C)

        # ---- block3: pad=1 conv on the 2x2 map
        y3 = conv_bias_relu(
            canvas_patches(zero_pad_canvas(x3, H2f, W2f), Wc3, NP3),
            w3_ref, b3_ref)
        x4 = crop_valid(y3)                                 # (H3*W3, C)

        # ---- block4: pad=1 conv
        y4 = conv_bias_relu(
            canvas_patches(zero_pad_canvas(x4, H3, W3), Wc3, NP3),
            w4_ref, b4_ref)
        o_ref[0] = crop_valid(y4).astype(o_ref.dtype)       # (H3*W3, C)

    return kernel


def _pool_select_matrix(Hf, Wf, row_stride, n_cols):
    """One-hot (Hf*Wf, n_cols) matrix selecting canvas row 2*hf*row_stride + 2*wf."""
    r = np.arange(Hf * Wf)
    idx = 2 * (r // Wf) * row_stride + 2 * (r % Wf)
    assert idx.max() < n_cols
    S = np.zeros((Hf * Wf, n_cols), np.float32)
    S[r, idx] = 1.0
    return jnp.asarray(S)


# ----------------------------- forward wrapper -----------------------------

@jax.jit
def embedding_forward(x_nchw, params):
    """x_nchw: (B, Cin, H, W) float32; params: list of 4 ConvBlock param dicts."""
    eps = 1e-5
    x = jnp.transpose(x_nchw, (0, 2, 3, 1)).astype(jnp.float32)   # NHWC
    B, H, W, Cin = x.shape
    Cout = params[0]["w"].shape[-1]

    # static geometry of the 4-block chain
    H1o, W1o = H - 2, W - 2               # block1 conv out
    H1f, W1f = H1o // 2, W1o // 2         # block1 pooled
    H2o, W2o = H1f - 2, W1f - 2           # block2 conv out
    H2f, W2f = H2o // 2, W2o // 2         # block2 pooled
    Hc3, Wc3 = H2f + 2, W2f + 2           # zero-padded canvas for blocks 3/4
    H3, W3 = H2f, W2f                     # blocks 3/4 output spatial
    assert min(H2o, W2o, H2f, W2f) > 0, "input too small for this network"
    P1 = H1o * W1o
    NP2 = (H1f - 2) * W1f - 2             # block2 canvas-conv rows
    NP3 = (Hc3 - 2) * Wc3 - 2             # block3/4 canvas-conv rows
    S1_cols = P1 - 1 - W1o
    S2_cols = NP2 - 1 - W1f

    # block1 im2col on the raw Cin=3 input: tiny, done once in XLA because a
    # 3-wide lane layout is not worth shuffling inside the kernel.
    K1 = 9 * Cin
    K1p = -(-K1 // 32) * 32               # pad contraction dim (27 -> 32)
    cols = [x[:, dy:dy + H1o, dx:dx + W1o, :]
            for dy in range(3) for dx in range(3)]
    patches1 = jnp.concatenate(cols, axis=-1).reshape(B, P1, K1)
    patches1 = jnp.pad(patches1, ((0, 0), (0, 0), (0, K1p - K1)))

    # fold conv bias + eval-mode BatchNorm into per-channel weight scale / bias
    def fold(p):
        scale = p["gamma"] / jnp.sqrt(p["var"] + eps)                # (Cout,)
        w = p["w"].reshape(-1, Cout) * scale                         # scale into weights
        b = (p["beta"] + (p["b"] - p["mean"]) * scale).reshape(1, Cout)
        return w, b

    w1, b1 = fold(params[0])
    w1 = jnp.pad(w1, ((0, K1p - K1), (0, 0)))
    w2, b2 = fold(params[1])
    w3, b3 = fold(params[2])
    w4, b4 = fold(params[3])

    S1 = _pool_select_matrix(H1f, W1f, W1o, S1_cols)
    S2 = _pool_select_matrix(H2f, W2f, W1f, S2_cols)

    kernel = make_fused_embedding_kernel(W1o, W1f, NP2, Wc3, NP3,
                                         H2f, W2f, H3, W3)
    K2 = 9 * Cout
    const2 = lambda b: (0, 0)

    out = pl.pallas_call(
        kernel,
        out_shape=jax.ShapeDtypeStruct((B, H3 * W3, Cout), jnp.float32),
        grid=(B,),
        in_specs=[
            pl.BlockSpec((1, P1, K1p), lambda b: (b, 0, 0)),      # block1 patches
            pl.BlockSpec((K1p, Cout), const2),                    # w1 (scale folded)
            pl.BlockSpec((1, Cout), const2),                      # b1
            pl.BlockSpec((K2, Cout), const2),                     # w2
            pl.BlockSpec((1, Cout), const2),                      # b2
            pl.BlockSpec((K2, Cout), const2),                     # w3
            pl.BlockSpec((1, Cout), const2),                      # b3
            pl.BlockSpec((K2, Cout), const2),                     # w4
            pl.BlockSpec((1, Cout), const2),                      # b4
            pl.BlockSpec((H1f * W1f, S1_cols), const2),           # pool1 selector
            pl.BlockSpec((H2f * W2f, S2_cols), const2),           # pool2 selector
        ],
        out_specs=pl.BlockSpec((1, H3 * W3, Cout), lambda b: (b, 0, 0)),
        compiler_params=pltpu.CompilerParams(
            dimension_semantics=("parallel",)),
    )(patches1, w1, b1, w2, b2, w3, b3, w4, b4, S1, S2)

    out = out.reshape(B, H3, W3, Cout)
    return jnp.transpose(out, (0, 3, 1, 2))                # NHWC -> NCHW


# ----------------------------- parameter init -----------------------------

def init_conv_block(key, cin, cout):
    k1, k2, k3, k4, k5, k6 = jax.random.split(key, 6)
    fan_in = cin * 9
    return dict(
        w=jax.random.normal(k1, (3, 3, cin, cout), jnp.float32) / jnp.sqrt(fan_in),
        b=0.05 * jax.random.normal(k2, (cout,), jnp.float32),
        gamma=1.0 + 0.1 * jax.random.normal(k3, (cout,), jnp.float32),
        beta=0.1 * jax.random.normal(k4, (cout,), jnp.float32),
        mean=0.1 * jax.random.normal(k5, (cout,), jnp.float32),
        var=jax.random.uniform(k6, (cout,), jnp.float32, minval=0.5, maxval=1.5),
    )


def init_embedding(key, in_channel=3, z_dim=64):
    ks = jax.random.split(key, 4)
    return [
        init_conv_block(ks[0], in_channel, z_dim),
        init_conv_block(ks[1], z_dim, z_dim),
        init_conv_block(ks[2], z_dim, z_dim),
        init_conv_block(ks[3], z_dim, z_dim),
    ]


# ----------------------------- pure-JAX reference -----------------------------

_BLOCK_CFG = [dict(padding=0, pool=2),
              dict(padding=0, pool=2),
              dict(padding=1, pool=None),
              dict(padding=1, pool=None)]


def _ref_block(x, p, padding, pool, eps=1e-5):
    y = jax.lax.conv_general_dilated(
        x, p["w"], (1, 1), [(padding, padding)] * 2,
        dimension_numbers=("NHWC", "HWIO", "NHWC")) + p["b"]
    y = (y - p["mean"]) / jnp.sqrt(p["var"] + eps) * p["gamma"] + p["beta"]
    y = jnp.maximum(y, 0.0)
    if pool is not None:
        y = jax.lax.reduce_window(y, -jnp.inf, jax.lax.max,
                                  (1, pool, pool, 1), (1, pool, pool, 1), "VALID")
    return y


def embedding_reference(x_nchw, params):
    x = jnp.transpose(x_nchw, (0, 2, 3, 1))
    for p, cfg in zip(params, _BLOCK_CFG):
        x = _ref_block(x, p, cfg["padding"], cfg["pool"])
    return jnp.transpose(x, (0, 3, 1, 2))


# ----------------------------- main -----------------------------

if __name__ == "__main__":
    key = jax.random.PRNGKey(0)
    k_x, k_p = jax.random.split(key)

    x = jax.random.normal(k_x, (2, 3, 16, 16), jnp.float32)   # NCHW, like PyTorch
    params = init_embedding(k_p, in_channel=3, z_dim=64)

    out = jax.block_until_ready(embedding_forward(x, params))
    ref = jax.block_until_ready(embedding_reference(x, params))

    assert out.shape == ref.shape, (out.shape, ref.shape)
    max_err = float(jnp.max(jnp.abs(out - ref)))
    assert jnp.allclose(out, ref, atol=1e-3, rtol=1e-3), max_err

    print("KERNEL_OK")
</pallas_src>

<mosaic_0001>
module attributes {stable_mosaic.version = 11 : i64} {
  func.func @kernel(%arg0: i32, %arg1: memref<1x196x32xf32, #tpu.memory_space<vmem>>, %arg2: memref<32x64xf32, #tpu.memory_space<vmem>>, %arg3: memref<1x64xf32, #tpu.memory_space<vmem>>, %arg4: memref<576x64xf32, #tpu.memory_space<vmem>>, %arg5: memref<1x64xf32, #tpu.memory_space<vmem>>, %arg6: memref<576x64xf32, #tpu.memory_space<vmem>>, %arg7: memref<1x64xf32, #tpu.memory_space<vmem>>, %arg8: memref<576x64xf32, #tpu.memory_space<vmem>>, %arg9: memref<1x64xf32, #tpu.memory_space<vmem>>, %arg10: memref<49x181xf32, #tpu.memory_space<vmem>>, %arg11: memref<4x25xf32, #tpu.memory_space<vmem>>, %arg12: memref<1x4x64xf32, #tpu.memory_space<vmem>>) attributes {dimension_semantics = [#tpu.dimension_semantics<parallel>], iteration_bounds = array<i64: 2>, scalar_prefetch = 0 : i64, scratch_operands = 0 : i64, tpu.core_type = #tpu.core_type<tc>, window_params = [{transform_indices = @transform_0, window_bounds = array<i64: 1, 196, 32>}, {pipeline_mode = #tpu.pipeline_mode<synchronous>, transform_indices = @transform_1, window_bounds = array<i64: 32, 64>}, {pipeline_mode = #tpu.pipeline_mode<synchronous>, transform_indices = @transform_2, window_bounds = array<i64: 1, 64>}, {pipeline_mode = #tpu.pipeline_mode<synchronous>, transform_indices = @transform_3, window_bounds = array<i64: 576, 64>}, {pipeline_mode = #tpu.pipeline_mode<synchronous>, transform_indices = @transform_4, window_bounds = array<i64: 1, 64>}, {pipeline_mode = #tpu.pipeline_mode<synchronous>, transform_indices = @transform_5, window_bounds = array<i64: 576, 64>}, {pipeline_mode = #tpu.pipeline_mode<synchronous>, transform_indices = @transform_6, window_bounds = array<i64: 1, 64>}, {pipeline_mode = #tpu.pipeline_mode<synchronous>, transform_indices = @transform_7, window_bounds = array<i64: 576, 64>}, {pipeline_mode = #tpu.pipeline_mode<synchronous>, transform_indices = @transform_8, window_bounds = array<i64: 1, 64>}, {pipeline_mode = #tpu.pipeline_mode<synchronous>, transform_indices = @transform_9, window_bounds = array<i64: 49, 181>}, {pipeline_mode = #tpu.pipeline_mode<synchronous>, transform_indices = @transform_10, window_bounds = array<i64: 4, 25>}, {transform_indices = @transform_11, window_bounds = array<i64: 1, 4, 64>}]} {
    %c0 = arith.constant 0 : index
    %c0_0 = arith.constant 0 : index
    %c0_1 = arith.constant 0 : index
    %0 = vector.load %arg1[%c0, %c0_0, %c0_1] : memref<1x196x32xf32, #tpu.memory_space<vmem>>, vector<1x196x32xf32>
    %1 = vector.shape_cast %0 : vector<1x196x32xf32> to vector<196x32xf32>
    %c0_2 = arith.constant 0 : index
    %c0_3 = arith.constant 0 : index
    %2 = vector.load %arg2[%c0_2, %c0_3] : memref<32x64xf32, #tpu.memory_space<vmem>>, vector<32x64xf32>
    %cst = arith.constant dense<0.000000e+00> : vector<196x64xf32>
    %3 = tpu.matmul %1, %2, %cst {dimension_numbers = #tpu.dot_dimension_numbers<[1], [0], [0], [1], [0, 0, 1, 1], [], []>} : vector<196x32xf32>, vector<32x64xf32>, vector<196x64xf32> -> vector<196x64xf32>
    %c0_4 = arith.constant 0 : index
    %c0_5 = arith.constant 0 : index
    %4 = vector.load %arg3[%c0_4, %c0_5] : memref<1x64xf32, #tpu.memory_space<vmem>>, vector<1x64xf32>
    %5 = vector.broadcast %4 : vector<1x64xf32> to vector<196x64xf32>
    %6 = arith.addf %3, %5 : vector<196x64xf32>
    %cst_6 = arith.constant 0.000000e+00 : f32
    %7 = vector.broadcast %cst_6 : f32 to vector<196x64xf32>
    %8 = arith.maximumf %6, %7 : vector<196x64xf32>
    %9 = vector.extract_strided_slice %8 {offsets = [0, 0], sizes = [195, 64], strides = [1, 1]} : vector<196x64xf32> to vector<195x64xf32>
    %10 = vector.extract_strided_slice %8 {offsets = [1, 0], sizes = [195, 64], strides = [1, 1]} : vector<196x64xf32> to vector<195x64xf32>
    %11 = arith.maximumf %9, %10 : vector<195x64xf32>
    %12 = vector.extract_strided_slice %11 {offsets = [0, 0], sizes = [181, 64], strides = [1, 1]} : vector<195x64xf32> to vector<181x64xf32>
    %13 = vector.extract_strided_slice %11 {offsets = [14, 0], sizes = [181, 64], strides = [1, 1]} : vector<195x64xf32> to vector<181x64xf32>
    %14 = arith.maximumf %12, %13 : vector<181x64xf32>
    %c0_7 = arith.constant 0 : index
    %c0_8 = arith.constant 0 : index
    %15 = vector.load %arg10[%c0_7, %c0_8] : memref<49x181xf32, #tpu.memory_space<vmem>>, vector<49x181xf32>
    %cst_9 = arith.constant dense<0.000000e+00> : vector<49x64xf32>
    %16 = tpu.matmul %15, %14, %cst_9 {dimension_numbers = #tpu.dot_dimension_numbers<[1], [0], [0], [1], [0, 0, 1, 1], [], []>} : vector<49x181xf32>, vector<181x64xf32>, vector<49x64xf32> -> vector<49x64xf32>
    %17 = vector.extract_strided_slice %16 {offsets = [0, 0], sizes = [33, 64], strides = [1, 1]} : vector<49x64xf32> to vector<33x64xf32>
    %18 = vector.extract_strided_slice %16 {offsets = [1, 0], sizes = [33, 64], strides = [1, 1]} : vector<49x64xf32> to vector<33x64xf32>
    %19 = vector.extract_strided_slice %16 {offsets = [2, 0], sizes = [33, 64], strides = [1, 1]} : vector<49x64xf32> to vector<33x64xf32>
    %20 = vector.extract_strided_slice %16 {offsets = [7, 0], sizes = [33, 64], strides = [1, 1]} : vector<49x64xf32> to vector<33x64xf32>
    %21 = vector.extract_strided_slice %16 {offsets = [8, 0], sizes = [33, 64], strides = [1, 1]} : vector<49x64xf32> to vector<33x64xf32>
    %22 = vector.extract_strided_slice %16 {offsets = [9, 0], sizes = [33, 64], strides = [1, 1]} : vector<49x64xf32> to vector<33x64xf32>
    %23 = vector.extract_strided_slice %16 {offsets = [14, 0], sizes = [33, 64], strides = [1, 1]} : vector<49x64xf32> to vector<33x64xf32>
    %24 = vector.extract_strided_slice %16 {offsets = [15, 0], sizes = [33, 64], strides = [1, 1]} : vector<49x64xf32> to vector<33x64xf32>
    %25 = vector.extract_strided_slice %16 {offsets = [16, 0], sizes = [33, 64], strides = [1, 1]} : vector<49x64xf32> to vector<33x64xf32>
    %26 = tpu.concatenate %17, %18, %19, %20, %21, %22, %23, %24, %25 in 1 : vector<33x64xf32>, vector<33x64xf32>, vector<33x64xf32>, vector<33x64xf32>, vector<33x64xf32>, vector<33x64xf32>, vector<33x64xf32>, vector<33x64xf32>, vector<33x64xf32> -> vector<33x576xf32>
    %c0_10 = arith.constant 0 : index
    %c0_11 = arith.constant 0 : index
    %27 = vector.load %arg4[%c0_10, %c0_11] : memref<576x64xf32, #tpu.memory_space<vmem>>, vector<576x64xf32>
    %cst_12 = arith.constant dense<0.000000e+00> : vector<33x64xf32>
    %28 = tpu.matmul %26, %27, %cst_12 {dimension_numbers = #tpu.dot_dimension_numbers<[1], [0], [0], [1], [0, 0, 1, 1], [], []>} : vector<33x576xf32>, vector<576x64xf32>, vector<33x64xf32> -> vector<33x64xf32>
    %c0_13 = arith.constant 0 : index
    %c0_14 = arith.constant 0 : index
    %29 = vector.load %arg5[%c0_13, %c0_14] : memref<1x64xf32, #tpu.memory_space<vmem>>, vector<1x64xf32>
    %30 = vector.broadcast %29 : vector<1x64xf32> to vector<33x64xf32>
    %31 = arith.addf %28, %30 : vector<33x64xf32>
    %cst_15 = arith.constant 0.000000e+00 : f32
    %32 = vector.broadcast %cst_15 : f32 to vector<33x64xf32>
    %33 = arith.maximumf %31, %32 : vector<33x64xf32>
    %34 = vector.extract_strided_slice %33 {offsets = [0, 0], sizes = [32, 64], strides = [1, 1]} : vector<33x64xf32> to vector<32x64xf32>
    %35 = vector.extract_strided_slice %33 {offsets = [1, 0], sizes = [32, 64], strides = [1, 1]} : vector<33x64xf32> to vector<32x64xf32>
    %36 = arith.maximumf %34, %35 : vector<32x64xf32>
    %37 = vector.extract_strided_slice %36 {offsets = [0, 0], sizes = [25, 64], strides = [1, 1]} : vector<32x64xf32> to vector<25x64xf32>
    %38 = vector.extract_strided_slice %36 {offsets = [7, 0], sizes = [25, 64], strides = [1, 1]} : vector<32x64xf32> to vector<25x64xf32>
    %39 = arith.maximumf %37, %38 : vector<25x64xf32>
    %c0_16 = arith.constant 0 : index
    %c0_17 = arith.constant 0 : index
    %40 = vector.load %arg11[%c0_16, %c0_17] : memref<4x25xf32, #tpu.memory_space<vmem>>, vector<4x25xf32>
    %cst_18 = arith.constant dense<0.000000e+00> : vector<4x64xf32>
    %41 = tpu.matmul %40, %39, %cst_18 {dimension_numbers = #tpu.dot_dimension_numbers<[1], [0], [0], [1], [0, 0, 1, 1], [], []>} : vector<4x25xf32>, vector<25x64xf32>, vector<4x64xf32> -> vector<4x64xf32>
    %cst_19 = arith.constant 0.000000e+00 : f32
    %42 = vector.broadcast %cst_19 : f32 to vector<4x64xf32>
    %cst_20 = arith.constant 0.000000e+00 : f32
    %43 = vector.broadcast %cst_20 : f32 to vector<1x64xf32>
    %44 = vector.extract_strided_slice %41 {offsets = [0, 0], sizes = [2, 64], strides = [1, 1]} : vector<4x64xf32> to vector<2x64xf32>
    %45 = tpu.concatenate %43, %44, %43 in 0 : vector<1x64xf32>, vector<2x64xf32>, vector<1x64xf32> -> vector<4x64xf32>
    %46 = vector.extract_strided_slice %41 {offsets = [2, 0], sizes = [2, 64], strides = [1, 1]} : vector<4x64xf32> to vector<2x64xf32>
    %47 = tpu.concatenate %43, %46, %43 in 0 : vector<1x64xf32>, vector<2x64xf32>, vector<1x64xf32> -> vector<4x64xf32>
    %48 = tpu.concatenate %42, %45, %47, %42 in 0 : vector<4x64xf32>, vector<4x64xf32>, vector<4x64xf32>, vector<4x64xf32> -> vector<16x64xf32>
    %49 = vector.extract_strided_slice %48 {offsets = [0, 0], sizes = [6, 64], strides = [1, 1]} : vector<16x64xf32> to vector<6x64xf32>
    %50 = vector.extract_strided_slice %48 {offsets = [1, 0], sizes = [6, 64], strides = [1, 1]} : vector<16x64xf32> to vector<6x64xf32>
    %51 = vector.extract_strided_slice %48 {offsets = [2, 0], sizes = [6, 64], strides = [1, 1]} : vector<16x64xf32> to vector<6x64xf32>
    %52 = vector.extract_strided_slice %48 {offsets = [4, 0], sizes = [6, 64], strides = [1, 1]} : vector<16x64xf32> to vector<6x64xf32>
    %53 = vector.extract_strided_slice %48 {offsets = [5, 0], sizes = [6, 64], strides = [1, 1]} : vector<16x64xf32> to vector<6x64xf32>
    %54 = vector.extract_strided_slice %48 {offsets = [6, 0], sizes = [6, 64], strides = [1, 1]} : vector<16x64xf32> to vector<6x64xf32>
    %55 = vector.extract_strided_slice %48 {offsets = [8, 0], sizes = [6, 64], strides = [1, 1]} : vector<16x64xf32> to vector<6x64xf32>
    %56 = vector.extract_strided_slice %48 {offsets = [9, 0], sizes = [6, 64], strides = [1, 1]} : vector<16x64xf32> to vector<6x64xf32>
    %57 = vector.extract_strided_slice %48 {offsets = [10, 0], sizes = [6, 64], strides = [1, 1]} : vector<16x64xf32> to vector<6x64xf32>
    %58 = tpu.concatenate %49, %50, %51, %52, %53, %54, %55, %56, %57 in 1 : vector<6x64xf32>, vector<6x64xf32>, vector<6x64xf32>, vector<6x64xf32>, vector<6x64xf32>, vector<6x64xf32>, vector<6x64xf32>, vector<6x64xf32>, vector<6x64xf32> -> vector<6x576xf32>
    %c0_21 = arith.constant 0 : index
    %c0_22 = arith.constant 0 : index
    %59 = vector.load %arg6[%c0_21, %c0_22] : memref<576x64xf32, #tpu.memory_space<vmem>>, vector<576x64xf32>
    %cst_23 = arith.constant dense<0.000000e+00> : vector<6x64xf32>
    %60 = tpu.matmul %58, %59, %cst_23 {dimension_numbers = #tpu.dot_dimension_numbers<[1], [0], [0], [1], [0, 0, 1, 1], [], []>} : vector<6x576xf32>, vector<576x64xf32>, vector<6x64xf32> -> vector<6x64xf32>
    %c0_24 = arith.constant 0 : index
    %c0_25 = arith.constant 0 : index
    %61 = vector.load %arg7[%c0_24, %c0_25] : memref<1x64xf32, #tpu.memory_space<vmem>>, vector<1x64xf32>
    %62 = vector.broadcast %61 : vector<1x64xf32> to vector<6x64xf32>
    %63 = arith.addf %60, %62 : vector<6x64xf32>
    %cst_26 = arith.constant 0.000000e+00 : f32
    %64 = vector.broadcast %cst_26 : f32 to vector<6x64xf32>
    %65 = arith.maximumf %63, %64 : vector<6x64xf32>
    %66 = vector.extract_strided_slice %65 {offsets = [0, 0], sizes = [2, 64], strides = [1, 1]} : vector<6x64xf32> to vector<2x64xf32>
    %67 = vector.extract_strided_slice %65 {offsets = [4, 0], sizes = [2, 64], strides = [1, 1]} : vector<6x64xf32> to vector<2x64xf32>
    %68 = tpu.concatenate %66, %67 in 0 : vector<2x64xf32>, vector<2x64xf32> -> vector<4x64xf32>
    %cst_27 = arith.constant 0.000000e+00 : f32
    %69 = vector.broadcast %cst_27 : f32 to vector<4x64xf32>
    %cst_28 = arith.constant 0.000000e+00 : f32
    %70 = vector.broadcast %cst_28 : f32 to vector<1x64xf32>
    %71 = vector.extract_strided_slice %68 {offsets = [0, 0], sizes = [2, 64], strides = [1, 1]} : vector<4x64xf32> to vector<2x64xf32>
    %72 = tpu.concatenate %70, %71, %70 in 0 : vector<1x64xf32>, vector<2x64xf32>, vector<1x64xf32> -> vector<4x64xf32>
    %73 = vector.extract_strided_slice %68 {offsets = [2, 0], sizes = [2, 64], strides = [1, 1]} : vector<4x64xf32> to vector<2x64xf32>
    %74 = tpu.concatenate %70, %73, %70 in 0 : vector<1x64xf32>, vector<2x64xf32>, vector<1x64xf32> -> vector<4x64xf32>
    %75 = tpu.concatenate %69, %72, %74, %69 in 0 : vector<4x64xf32>, vector<4x64xf32>, vector<4x64xf32>, vector<4x64xf32> -> vector<16x64xf32>
    %76 = vector.extract_strided_slice %75 {offsets = [0, 0], sizes = [6, 64], strides = [1, 1]} : vector<16x64xf32> to vector<6x64xf32>
    %77 = vector.extract_strided_slice %75 {offsets = [1, 0], sizes = [6, 64], strides = [1, 1]} : vector<16x64xf32> to vector<6x64xf32>
    %78 = vector.extract_strided_slice %75 {offsets = [2, 0], sizes = [6, 64], strides = [1, 1]} : vector<16x64xf32> to vector<6x64xf32>
    %79 = vector.extract_strided_slice %75 {offsets = [4, 0], sizes = [6, 64], strides = [1, 1]} : vector<16x64xf32> to vector<6x64xf32>
    %80 = vector.extract_strided_slice %75 {offsets = [5, 0], sizes = [6, 64], strides = [1, 1]} : vector<16x64xf32> to vector<6x64xf32>
    %81 = vector.extract_strided_slice %75 {offsets = [6, 0], sizes = [6, 64], strides = [1, 1]} : vector<16x64xf32> to vector<6x64xf32>
    %82 = vector.extract_strided_slice %75 {offsets = [8, 0], sizes = [6, 64], strides = [1, 1]} : vector<16x64xf32> to vector<6x64xf32>
    %83 = vector.extract_strided_slice %75 {offsets = [9, 0], sizes = [6, 64], strides = [1, 1]} : vector<16x64xf32> to vector<6x64xf32>
    %84 = vector.extract_strided_slice %75 {offsets = [10, 0], sizes = [6, 64], strides = [1, 1]} : vector<16x64xf32> to vector<6x64xf32>
    %85 = tpu.concatenate %76, %77, %78, %79, %80, %81, %82, %83, %84 in 1 : vector<6x64xf32>, vector<6x64xf32>, vector<6x64xf32>, vector<6x64xf32>, vector<6x64xf32>, vector<6x64xf32>, vector<6x64xf32>, vector<6x64xf32>, vector<6x64xf32> -> vector<6x576xf32>
    %c0_29 = arith.constant 0 : index
    %c0_30 = arith.constant 0 : index
    %86 = vector.load %arg8[%c0_29, %c0_30] : memref<576x64xf32, #tpu.memory_space<vmem>>, vector<576x64xf32>
    %cst_31 = arith.constant dense<0.000000e+00> : vector<6x64xf32>
    %87 = tpu.matmul %85, %86, %cst_31 {dimension_numbers = #tpu.dot_dimension_numbers<[1], [0], [0], [1], [0, 0, 1, 1], [], []>} : vector<6x576xf32>, vector<576x64xf32>, vector<6x64xf32> -> vector<6x64xf32>
    %c0_32 = arith.constant 0 : index
    %c0_33 = arith.constant 0 : index
    %88 = vector.load %arg9[%c0_32, %c0_33] : memref<1x64xf32, #tpu.memory_space<vmem>>, vector<1x64xf32>
    %89 = vector.broadcast %88 : vector<1x64xf32> to vector<6x64xf32>
    %90 = arith.addf %87, %89 : vector<6x64xf32>
    %cst_34 = arith.constant 0.000000e+00 : f32
    %91 = vector.broadcast %cst_34 : f32 to vector<6x64xf32>
    %92 = arith.maximumf %90, %91 : vector<6x64xf32>
    %93 = vector.extract_strided_slice %92 {offsets = [0, 0], sizes = [2, 64], strides = [1, 1]} : vector<6x64xf32> to vector<2x64xf32>
    %94 = vector.extract_strided_slice %92 {offsets = [4, 0], sizes = [2, 64], strides = [1, 1]} : vector<6x64xf32> to vector<2x64xf32>
    %95 = tpu.concatenate %93, %94 in 0 : vector<2x64xf32>, vector<2x64xf32> -> vector<4x64xf32>
    %c0_35 = arith.constant 0 : index
    %c0_36 = arith.constant 0 : index
    %c0_37 = arith.constant 0 : index
    %96 = vector.load %arg12[%c0_35, %c0_36, %c0_37] : memref<1x4x64xf32, #tpu.memory_space<vmem>>, vector<1x4x64xf32>
    %97 = vector.shape_cast %96 : vector<1x4x64xf32> to vector<4x64xf32>
    %98 = vector.shape_cast %95 : vector<4x64xf32> to vector<1x4x64xf32>
    tpu.vector_store %arg12[%c0_35, %c0_36, %c0_37], %98 {strides = array<i32>} : memref<1x4x64xf32, #tpu.memory_space<vmem>>, vector<1x4x64xf32>,
    return
  }
  func.func @transform_0(%arg0: i32) -> (i32, i32, i32) {
    %c0_i32 = arith.constant 0 : i32
    %c0_i32_0 = arith.constant 0 : i32
    %c0_i32_1 = arith.constant 0 : i32
    return %arg0, %c0_i32, %c0_i32_0 : i32, i32, i32
  }
  func.func @transform_1(%arg0: i32) -> (i32, i32) {
    %c0_i32 = arith.constant 0 : i32
    %c0_i32_0 = arith.constant 0 : i32
    %c0_i32_1 = arith.constant 0 : i32
    return %c0_i32, %c0_i32_0 : i32, i32
  }
  func.func @transform_2(%arg0: i32) -> (i32, i32) {
    %c0_i32 = arith.constant 0 : i32
    %c0_i32_0 = arith.constant 0 : i32
    %c0_i32_1 = arith.constant 0 : i32
    return %c0_i32, %c0_i32_0 : i32, i32
  }
  func.func @transform_3(%arg0: i32) -> (i32, i32) {
    %c0_i32 = arith.constant 0 : i32
    %c0_i32_0 = arith.constant 0 : i32
    %c0_i32_1 = arith.constant 0 : i32
    return %c0_i32, %c0_i32_0 : i32, i32
  }
  func.func @transform_4(%arg0: i32) -> (i32, i32) {
    %c0_i32 = arith.constant 0 : i32
    %c0_i32_0 = arith.constant 0 : i32
    %c0_i32_1 = arith.constant 0 : i32
    return %c0_i32, %c0_i32_0 : i32, i32
  }
  func.func @transform_5(%arg0: i32) -> (i32, i32) {
    %c0_i32 = arith.constant 0 : i32
    %c0_i32_0 = arith.constant 0 : i32
    %c0_i32_1 = arith.constant 0 : i32
    return %c0_i32, %c0_i32_0 : i32, i32
  }
  func.func @transform_6(%arg0: i32) -> (i32, i32) {
    %c0_i32 = arith.constant 0 : i32
    %c0_i32_0 = arith.constant 0 : i32
    %c0_i32_1 = arith.constant 0 : i32
    return %c0_i32, %c0_i32_0 : i32, i32
  }
  func.func @transform_7(%arg0: i32) -> (i32, i32) {
    %c0_i32 = arith.constant 0 : i32
    %c0_i32_0 = arith.constant 0 : i32
    %c0_i32_1 = arith.constant 0 : i32
    return %c0_i32, %c0_i32_0 : i32, i32
  }
  func.func @transform_8(%arg0: i32) -> (i32, i32) {
    %c0_i32 = arith.constant 0 : i32
    %c0_i32_0 = arith.constant 0 : i32
    %c0_i32_1 = arith.constant 0 : i32
    return %c0_i32, %c0_i32_0 : i32, i32
  }
  func.func @transform_9(%arg0: i32) -> (i32, i32) {
    %c0_i32 = arith.constant 0 : i32
    %c0_i32_0 = arith.constant 0 : i32
    %c0_i32_1 = arith.constant 0 : i32
    return %c0_i32, %c0_i32_0 : i32, i32
  }
  func.func @transform_10(%arg0: i32) -> (i32, i32) {
    %c0_i32 = arith.constant 0 : i32
    %c0_i32_0 = arith.constant 0 : i32
    %c0_i32_1 = arith.constant 0 : i32
    return %c0_i32, %c0_i32_0 : i32, i32
  }
  func.func @transform_11(%arg0: i32) -> (i32, i32, i32) {
    %c0_i32 = arith.constant 0 : i32
    %c0_i32_0 = arith.constant 0 : i32
    %c0_i32_1 = arith.constant 0 : i32
    return %arg0, %c0_i32, %c0_i32_0 : i32, i32, i32
  }
}

</mosaic_0001>

<llo_original>
// kernel: embedding_forward.1
$region0: #{embedding_forward.1}
  #allocation0 [shape = 'u32[]', space=smem, size = 0x4, offset = 0x4, fixed_abs, tag = 'smem constant byte address 0x4 - core index']
  #allocation1 [shape = 'u32[144,128]{1,0:T(1,128)}', space=vmem, size = 0x12000, scoped, tag = 'internal scratch']
  %s0 = inlined_call_operand.vmem [shape: f32[2,196,32], index: 0, kind: input, shape index: {}]
  %s1 = inlined_call_operand.vmem [shape: f32[32,64], index: 1, kind: input, shape index: {}]
  %s2 = inlined_call_operand.vmem [shape: f32[1,64], index: 2, kind: input, shape index: {}]
  %s3 = inlined_call_operand.vmem [shape: f32[576,64], index: 3, kind: input, shape index: {}]
  %s4 = inlined_call_operand.vmem [shape: f32[1,64], index: 4, kind: input, shape index: {}]
  %s5 = inlined_call_operand.vmem [shape: f32[576,64], index: 5, kind: input, shape index: {}]
  %s6 = inlined_call_operand.vmem [shape: f32[1,64], index: 6, kind: input, shape index: {}]
  %s7 = inlined_call_operand.vmem [shape: f32[576,64], index: 7, kind: input, shape index: {}]
  %s8 = inlined_call_operand.vmem [shape: f32[1,64], index: 8, kind: input, shape index: {}]
  %s9 = inlined_call_operand.vmem [shape: f32[49,181], index: 9, kind: input, shape index: {}]
  %s10 = inlined_call_operand.vmem [shape: f32[4,25], index: 10, kind: input, shape index: {}]
  %s11 = inlined_call_operand.hbm [shape: f32[2,4,64], index: 11, kind: output, shape index: {}]
  %s12 = sld [smem:[#allocation0]]
  $region77: #{embedding_forward.1} parent=0
    _
  %s14 = ssub.s32 1, %s12
  %s15 = scalar_select 0, %s14, %s12
  $region1: #{embedding_forward.1} parent=0
    #allocation2 [shape = 'u8[4096]{0}', space=vmem, size = 0x1000, scoped, tag = 'output window, operand 0']
    #allocation3 [shape = 's32[2]{0}', space=sflag, size = 0x8, scoped, tag = 'scoped memory for embedding_forward.1']
    %16 = vsyncpa [#allocation3], 0
    %s17 = scalar_lea.sflag [#allocation3], 1
    %18 = vsyncpa %s17, 0
    loop: start=0, step=1, limit=4
    $region2: #{embedding_forward.1} parent=1 // loop_pre_header
      _
    $region3: #{embedding_forward.1} parent=1 // loop_header
      %s20 = sphi 0, %s24
      %p21 = scmp.ge.s32.totalorder %s20, 4
      %s30 = sphi 0, %s32
      %s33 = sphi 0, %s30
      %s34 = sphi 0, %s33
      %s50 = sphi 0, %s34
      %s54 = sphi 0, %s54
      %s56 = sphi 0, %s54
      %s57 = sphi 0, %s56
      %s71 = sphi 0, %s57
      %s75 = sphi 0, %s75
      %s77 = sphi 0, %s75
      %s78 = sphi 0, %s77
      %s92 = sphi 0, %s78
      %s96 = sphi 0, %s96
      %s98 = sphi 0, %s96
      %s99 = sphi 0, %s98
      %s113 = sphi 0, %s99
      %s117 = sphi 0, %s117
      %s119 = sphi 0, %s117
      %s120 = sphi 0, %s119
      %s134 = sphi 0, %s120
      %s138 = sphi 0, %s138
      %s140 = sphi 0, %s138
      %s141 = sphi 0, %s140
      %s155 = sphi 0, %s141
      %s159 = sphi 0, %s159
      %s161 = sphi 0, %s159
      %s162 = sphi 0, %s161
      %s176 = sphi 0, %s162
      %s180 = sphi 0, %s180
      %s182 = sphi 0, %s180
      %s183 = sphi 0, %s182
      %s197 = sphi 0, %s183
      %s201 = sphi 0, %s201
      %s203 = sphi 0, %s201
      %s204 = sphi 0, %s203
      %s218 = sphi 0, %s204
      %s222 = sphi 0, %s222
      %s224 = sphi 0, %s222
      %s225 = sphi 0, %s224
      %s239 = sphi 0, %s225
      %s243 = sphi 0, %s243
      %s245 = sphi 0, %s243
      %s246 = sphi 0, %s245
      %s260 = sphi 0, %s246
      %s266 = sphi 0, %s268
      %s269 = sphi 0, %s266
      %s270 = sphi 0, %s269
      %s286 = sphi 0, %s270
    $region4: #{embedding_forward.1} parent=1 // loop_header_branch
      %23 = sbr.rel (%p21) target = $region8
    $region5: #{embedding_forward.1} parent=1 // loop_body
      %s25 = ssub.s32 %s20, 1
      %s26 = ssub.s32 %s20, 2
      %s27 = sadd.s32 %s20, 1
      %s28 = ssub.s32 %s20, %s27
      %p29 = scmp.eq.s32.totalorder %s28, 0
      %s31 = sadd.s32 %s30, 1
      %s32 = scalar_select %p29, %s30, %s31
      %p35 = pneg %p29
      %p36 = scmp.eq.s32.totalorder %s20, 1
      %p37 = por %p35, %p36
      %p38 = scmp.ne.s32.totalorder %s30, %s33
      %p39 = scmp.eq.s32.totalorder %s20, 0
      %p40 = por %p38, %p39
      %p41 = scmp.ne.s32.totalorder %s30, %s33
      %p42 = scmp.eq.s32.totalorder %s25, 1
      %p43 = por %p41, %p42
      %p44 = scmp.ne.s32.totalorder %s33, %s34
      %p45 = scmp.eq.s32.totalorder %s25, 0
      %p46 = por %p44, %p45
      %p47 = scmp.ne.s32.totalorder %s33, %s34
      %p48 = scmp.eq.s32.totalorder %s26, 1
      %p49 = por %p47, %p48
      %p51 = scmp.ne.s32.totalorder %s34, %s50
      %p52 = scmp.eq.s32.totalorder %s26, 0
      %p53 = por %p51, %p52
      %s55 = sadd.s32 %s54, 1
      %p58 = scmp.eq.s32.totalorder %s20, 1
      %p59 = scmp.ne.s32.totalorder %s54, %s56
      %p60 = scmp.eq.s32.totalorder %s20, 0
      %p61 = por %p59, %p60
      %p62 = scmp.ne.s32.totalorder %s54, %s56
      %p63 = scmp.eq.s32.totalorder %s25, 1
      %p64 = por %p62, %p63
      %p65 = scmp.ne.s32.totalorder %s56, %s57
      %p66 = scmp.eq.s32.totalorder %s25, 0
      %p67 = por %p65, %p66
      %p68 = scmp.ne.s32.totalorder %s56, %s57
      %p69 = scmp.eq.s32.totalorder %s26, 1
      %p70 = por %p68, %p69
      %p72 = scmp.ne.s32.totalorder %s57, %s71
      %p73 = scmp.eq.s32.totalorder %s26, 0
      %p74 = por %p72, %p73
      %s76 = sadd.s32 %s75, 1
      %p79 = scmp.eq.s32.totalorder %s20, 1
      %p80 = scmp.ne.s32.totalorder %s75, %s77
      %p81 = scmp.eq.s32.totalorder %s20, 0
      %p82 = por %p80, %p81
      %p83 = scmp.ne.s32.totalorder %s75, %s77
      %p84 = scmp.eq.s32.totalorder %s25, 1
      %p85 = por %p83, %p84
      %p86 = scmp.ne.s32.totalorder %s77, %s78
      %p87 = scmp.eq.s32.totalorder %s25, 0
      %p88 = por %p86, %p87
      %p89 = scmp.ne.s32.totalorder %s77, %s78
      %p90 = scmp.eq.s32.totalorder %s26, 1
      %p91 = por %p89, %p90
      %p93 = scmp.ne.s32.totalorder %s78, %s92
      %p94 = scmp.eq.s32.totalorder %s26, 0
      %p95 = por %p93, %p94
      %s97 = sadd.s32 %s96, 1
      %p100 = scmp.eq.s32.totalorder %s20, 1
      %p101 = scmp.ne.s32.totalorder %s96, %s98
      %p102 = scmp.eq.s32.totalorder %s20, 0
      %p103 = por %p101, %p102
      %p104 = scmp.ne.s32.totalorder %s96, %s98
      %p105 = scmp.eq.s32.totalorder %s25, 1
      %p106 = por %p104, %p105
      %p107 = scmp.ne.s32.totalorder %s98, %s99
      %p108 = scmp.eq.s32.totalorder %s25, 0
      %p109 = por %p107, %p108
      %p110 = scmp.ne.s32.totalorder %s98, %s99
      %p111 = scmp.eq.s32.totalorder %s26, 1
      %p112 = por %p110, %p111
      %p114 = scmp.ne.s32.totalorder %s99, %s113
      %p115 = scmp.eq.s32.totalorder %s26, 0
      %p116 = por %p114, %p115
      %s118 = sadd.s32 %s117, 1
      %p121 = scmp.eq.s32.totalorder %s20, 1
      %p122 = scmp.ne.s32.totalorder %s117, %s119
      %p123 = scmp.eq.s32.totalorder %s20, 0
      %p124 = por %p122, %p123
      %p125 = scmp.ne.s32.totalorder %s117, %s119
      %p126 = scmp.eq.s32.totalorder %s25, 1
      %p127 = por %p125, %p126
      %p128 = scmp.ne.s32.totalorder %s119, %s120
      %p129 = scmp.eq.s32.totalorder %s25, 0
      %p130 = por %p128, %p129
      %p131 = scmp.ne.s32.totalorder %s119, %s120
      %p132 = scmp.eq.s32.totalorder %s26, 1
      %p133 = por %p131, %p132
      %p135 = scmp.ne.s32.totalorder %s120, %s134
      %p136 = scmp.eq.s32.totalorder %s26, 0
      %p137 = por %p135, %p136
      %s139 = sadd.s32 %s138, 1
      %p142 = scmp.eq.s32.totalorder %s20, 1
      %p143 = scmp.ne.s32.totalorder %s138, %s140
      %p144 = scmp.eq.s32.totalorder %s20, 0
      %p145 = por %p143, %p144
      %p146 = scmp.ne.s32.totalorder %s138, %s140
      %p147 = scmp.eq.s32.totalorder %s25, 1
      %p148 = por %p146, %p147
      %p149 = scmp.ne.s32.totalorder %s140, %s141
      %p150 = scmp.eq.s32.totalorder %s25, 0
      %p151 = por %p149, %p150
      %p152 = scmp.ne.s32.totalorder %s140, %s141
      %p153 = scmp.eq.s32.totalorder %s26, 1
      %p154 = por %p152, %p153
      %p156 = scmp.ne.s32.totalorder %s141, %s155
      %p157 = scmp.eq.s32.totalorder %s26, 0
      %p158 = por %p156, %p157
      %s160 = sadd.s32 %s159, 1
      %p163 = scmp.eq.s32.totalorder %s20, 1
      %p164 = scmp.ne.s32.totalorder %s159, %s161
      %p165 = scmp.eq.s32.totalorder %s20, 0
      %p166 = por %p164, %p165
      %p167 = scmp.ne.s32.totalorder %s159, %s161
      %p168 = scmp.eq.s32.totalorder %s25, 1
      %p169 = por %p167, %p168
      %p170 = scmp.ne.s32.totalorder %s161, %s162
      %p171 = scmp.eq.s32.totalorder %s25, 0
      %p172 = por %p170, %p171
      %p173 = scmp.ne.s32.totalorder %s161, %s162
      %p174 = scmp.eq.s32.totalorder %s26, 1
      %p175 = por %p173, %p174
      %p177 = scmp.ne.s32.totalorder %s162, %s176
      %p178 = scmp.eq.s32.totalorder %s26, 0
      %p179 = por %p177, %p178
      %s181 = sadd.s32 %s180, 1
      %p184 = scmp.eq.s32.totalorder %s20, 1
      %p185 = scmp.ne.s32.totalorder %s180, %s182
      %p186 = scmp.eq.s32.totalorder %s20, 0
      %p187 = por %p185, %p186
      %p188 = scmp.ne.s32.totalorder %s180, %s182
      %p189 = scmp.eq.s32.totalorder %s25, 1
      %p190 = por %p188, %p189
      %p191 = scmp.ne.s32.totalorder %s182, %s183
      %p192 = scmp.eq.s32.totalorder %s25, 0
      %p193 = por %p191, %p192
      %p194 = scmp.ne.s32.totalorder %s182, %s183
      %p195 = scmp.eq.s32.totalorder %s26, 1
      %p196 = por %p194, %p195
      %p198 = scmp.ne.s32.totalorder %s183, %s197
      %p199 = scmp.eq.s32.totalorder %s26, 0
      %p200 = por %p198, %p199
      %s202 = sadd.s32 %s201, 1
      %p205 = scmp.eq.s32.totalorder %s20, 1
      %p206 = scmp.ne.s32.totalorder %s201, %s203
      %p207 = scmp.eq.s32.totalorder %s20, 0
      %p208 = por %p206, %p207
      %p209 = scmp.ne.s32.totalorder %s201, %s203
      %p210 = scmp.eq.s32.totalorder %s25, 1
      %p211 = por %p209, %p210
      %p212 = scmp.ne.s32.totalorder %s203, %s204
      %p213 = scmp.eq.s32.totalorder %s25, 0
      %p214 = por %p212, %p213
      %p215 = scmp.ne.s32.totalorder %s203, %s204
      %p216 = scmp.eq.s32.totalorder %s26, 1
      %p217 = por %p215, %p216
      %p219 = scmp.ne.s32.totalorder %s204, %s218
      %p220 = scmp.eq.s32.totalorder %s26, 0
      %p221 = por %p219, %p220
      %s223 = sadd.s32 %s222, 1
      %p226 = scmp.eq.s32.totalorder %s20, 1
      %p227 = scmp.ne.s32.totalorder %s222, %s224
      %p228 = scmp.eq.s32.totalorder %s20, 0
      %p229 = por %p227, %p228
      %p230 = scmp.ne.s32.totalorder %s222, %s224
      %p231 = scmp.eq.s32.totalorder %s25, 1
      %p232 = por %p230, %p231
      %p233 = scmp.ne.s32.totalorder %s224, %s225
      %p234 = scmp.eq.s32.totalorder %s25, 0
      %p235 = por %p233, %p234
      %p236 = scmp.ne.s32.totalorder %s224, %s225
      %p237 = scmp.eq.s32.totalorder %s26, 1
      %p238 = por %p236, %p237
      %p240 = scmp.ne.s32.totalorder %s225, %s239
      %p241 = scmp.eq.s32.totalorder %s26, 0
      %p242 = por %p240, %p241
      %s244 = sadd.s32 %s243, 1
      %p247 = scmp.eq.s32.totalorder %s20, 1
      %p248 = scmp.ne.s32.totalorder %s243, %s245
      %p249 = scmp.eq.s32.totalorder %s20, 0
      %p250 = por %p248, %p249
      %p251 = scmp.ne.s32.totalorder %s243, %s245
      %p252 = scmp.eq.s32.totalorder %s25, 1
      %p253 = por %p251, %p252
      %p254 = scmp.ne.s32.totalorder %s245, %s246
      %p255 = scmp.eq.s32.totalorder %s25, 0
      %p256 = por %p254, %p255
      %p257 = scmp.ne.s32.totalorder %s245, %s246
      %p258 = scmp.eq.s32.totalorder %s26, 1
      %p259 = por %p257, %p258
      %p261 = scmp.ne.s32.totalorder %s246, %s260
      %p262 = scmp.eq.s32.totalorder %s26, 0
      %p263 = por %p261, %p262
      %s264 = ssub.s32 %s20, %s27
      %p265 = scmp.eq.s32.totalorder %s264, 0
      %s267 = sadd.s32 %s266, 1
      %s268 = scalar_select %p265, %s266, %s267
      %p271 = pneg %p265
      %p272 = scmp.eq.s32.totalorder %s20, 1
      %p273 = por %p271, %p272
      %p274 = scmp.ne.s32.totalorder %s266, %s269
      %p275 = scmp.eq.s32.totalorder %s20, 0
      %p276 = por %p274, %p275
      %p277 = scmp.ne.s32.totalorder %s266, %s269
      %p278 = scmp.eq.s32.totalorder %s25, 1
      %p279 = por %p277, %p278
      %p280 = scmp.ne.s32.totalorder %s269, %s270
      %p281 = scmp.eq.s32.totalorder %s25, 0
      %p282 = por %p280, %p281
      %p283 = scmp.ne.s32.totalorder %s269, %s270
      %p284 = scmp.eq.s32.totalorder %s26, 1
      %p285 = por %p283, %p284
      %p287 = scmp.ne.s32.totalorder %s270, %s286
      %p288 = scmp.eq.s32.totalorder %s26, 0
      %p289 = por %p287, %p288
      %p290 = scmp.le.s32.totalorder 1, %s20
      %p291 = scmp.lt.s32.totalorder %s20, 3
      %p292 = pnand %p290, %p291
      %p293 = pneg %p292
      // Predicated region
      $region9: #{embedding_forward.1} parent=5 // pred_check
        _
      $region10: #{embedding_forward.1} parent=5 // pred_check_branch
        %295 = sbr.rel (%p292) target = $region12
      $region11: #{embedding_forward.1} parent=5 // pred_region
        %s296 = ssub.s32 %s20, 1
        // Predicated region
        $region13: #{embedding_forward.1} parent=11 // pred_check
          %p297 = pneg %p67
        $region14: #{embedding_forward.1} parent=11 // pred_check_branch
          %299 = sbr.rel (%p297) target = $region16
        $region15: #{embedding_forward.1} parent=11 // pred_region
          _
        $region16: #{embedding_forward.1} parent=11 // pred_fallthru
          _
        // Predicated region
        $region17: #{embedding_forward.1} parent=11 // pred_check
          %p300 = pneg %p88
        $region18: #{embedding_forward.1} parent=11 // pred_check_branch
          %302 = sbr.rel (%p300) target = $region20
        $region19: #{embedding_forward.1} parent=11 // pred_region
          _
        $region20: #{embedding_forward.1} parent=11 // pred_fallthru
          _
        // Predicated region
        $region21: #{embedding_forward.1} parent=11 // pred_check
          %p303 = pneg %p109
        $region22: #{embedding_forward.1} parent=11 // pred_check_branch
          %305 = sbr.rel (%p303) target = $region24
        $region23: #{embedding_forward.1} parent=11 // pred_region
          _
        $region24: #{embedding_forward.1} parent=11 // pred_fallthru
          _
        // Predicated region
        $region25: #{embedding_forward.1} parent=11 // pred_check
          %p306 = pneg %p130
        $region26: #{embedding_forward.1} parent=11 // pred_check_branch
          %308 = sbr.rel (%p306) target = $region28
        $region27: #{embedding_forward.1} parent=11 // pred_region
          _
        $region28: #{embedding_forward.1} parent=11 // pred_fallthru
          _
        // Predicated region
        $region29: #{embedding_forward.1} parent=11 // pred_check
          %p309 = pneg %p151
        $region30: #{embedding_forward.1} parent=11 // pred_check_branch
          %311 = sbr.rel (%p309) target = $region32
        $region31: #{embedding_forward.1} parent=11 // pred_region
          _
        $region32: #{embedding_forward.1} parent=11 // pred_fallthru
          _
        // Predicated region
        $region33: #{embedding_forward.1} parent=11 // pred_check
          %p312 = pneg %p172
        $region34: #{embedding_forward.1} parent=11 // pred_check_branch
          %314 = sbr.rel (%p312) target = $region36
        $region35: #{embedding_forward.1} parent=11 // pred_region
          _
        $region36: #{embedding_forward.1} parent=11 // pred_fallthru
          _
        // Predicated region
        $region37: #{embedding_forward.1} parent=11 // pred_check
          %p315 = pneg %p193
        $region38: #{embedding_forward.1} parent=11 // pred_check_branch
          %317 = sbr.rel (%p315) target = $region40
        $region39: #{embedding_forward.1} parent=11 // pred_region
          _
        $region40: #{embedding_forward.1} parent=11 // pred_fallthru
          _
        // Predicated region
        $region41: #{embedding_forward.1} parent=11 // pred_check
          %p318 = pneg %p214
        $region42: #{embedding_forward.1} parent=11 // pred_check_branch
          %320 = sbr.rel (%p318) target = $region44
        $region43: #{embedding_forward.1} parent=11 // pred_region
          _
        $region44: #{embedding_forward.1} parent=11 // pred_fallthru
          _
        // Predicated region
        $region45: #{embedding_forward.1} parent=11 // pred_check
          %p321 = pneg %p235
        $region46: #{embedding_forward.1} parent=11 // pred_check_branch
          %323 = sbr.rel (%p321) target = $region48
        $region47: #{embedding_forward.1} parent=11 // pred_region
          _
        $region48: #{embedding_forward.1} parent=11 // pred_fallthru
          _
        // Predicated region
        $region49: #{embedding_forward.1} parent=11 // pred_check
          %p324 = pneg %p256
        $region50: #{embedding_forward.1} parent=11 // pred_check_branch
          %326 = sbr.rel (%p324) target = $region52
        $region51: #{embedding_forward.1} parent=11 // pred_region
          _
        $region52: #{embedding_forward.1} parent=11 // pred_fallthru
          _
      $region12: #{embedding_forward.1} parent=5 // pred_fallthru
        _
      %p327 = scmp.lt.s32.totalorder %s20, 2
      // Predicated region
      $region53: #{embedding_forward.1} parent=5 // pred_check
        %p328 = pneg %p327
      $region54: #{embedding_forward.1} parent=5 // pred_check_branch
        %330 = sbr.rel (%p328) target = $region56
      $region55: #{embedding_forward.1} parent=5 // pred_region
        // Predicated region
        $region57: #{embedding_forward.1} parent=55 // pred_check
          %p331 = pneg %p40
        $region58: #{embedding_forward.1} parent=55 // pred_check_branch
          %333 = sbr.rel (%p331) target = $region60
        $region59: #{embedding_forward.1} parent=55 // pred_region
          %p334 = scmp.lt.s32.totalorder %s20, 1
          %s335 = scalar_select %p334, %s20, 1
          %s336 = smul.addr %s335, 25
          %s337 = smul.addr %s336, 8
          %s338 = scalar_lea.vmem %s0, %s337
        $region60: #{embedding_forward.1} parent=55 // pred_fallthru
          _
      $region56: #{embedding_forward.1} parent=5 // pred_fallthru
        _
      %p339 = scmp.le.s32.totalorder 1, %s20
      %p340 = scmp.lt.s32.totalorder %s20, 3
      %p341 = pnand %p339, %p340
      %p342 = pneg %p341
      // Predicated region
      $region61: #{embedding_forward.1} parent=5 // pred_check
        _
      $region62: #{embedding_forward.1} parent=5 // pred_check_branch
        %344 = sbr.rel (%p341) target = $region64
      $region63: #{embedding_forward.1} parent=5 // pred_region
        %s345 = ssub.s32 %s20, 1
        %p346 = scmp.lt.s32.totalorder %s25, 1
        %s347 = scalar_select %p346, %s25, 1
        %s348 = smul.addr %s347, 25
        %s349 = smul.addr %s348, 8
        %s350 = scalar_lea.vmem %s0, %s349
        %p351 = pneg %p46
        %p352 = pneg %p43
        %p353 = pneg %p67
        %p354 = pneg %p64
        %p355 = pneg %p88
        %p356 = pneg %p85
        %p357 = pneg %p109
        %p358 = pneg %p106
        %p359 = pneg %p130
        %p360 = pneg %p127
        %p361 = pneg %p151
        %p362 = pneg %p148
        %p363 = pneg %p172
        %p364 = pneg %p169
        %p365 = pneg %p193
        %p366 = pneg %p190
        %p367 = pneg %p214
        %p368 = pneg %p211
        %p369 = pneg %p235
        %p370 = pneg %p232
        %p371 = pneg %p256
        %p372 = pneg %p253
        %p373 = pneg %p282
        %p374 = pneg %p279
        %s375 = sand.u32 %s269, 1
        %s376 = scalar_lea.sflag [#allocation3], %s375
        %s377 = sand.u32 %s269, 1
        %s378 = smul.addr %s377, 4
        %s379 = scalar_lea.vmem [#allocation2], %s378
        %p380 = scmp.lt.s32.totalorder %s25, 1
        %s381 = scalar_select %p380, %s25, 1
        %s382 = smul.addr %s381, 25
        %s383 = smul.addr %s382, 8
        %s384 = scalar_lea.vmem %s0, %s383
        %v385 = vld [vmem:[%s384] sm:$0xff]
        %v386 = vld [vmem:[%s384 + $0x8] sm:$0xff]
        %v387 = vld [vmem:[%s384 + $0x10] sm:$0xff]
        %v388 = vld [vmem:[%s384 + $0x18] sm:$0xff]
        %v389 = vld [vmem:[%s384 + $0x20] sm:$0xff]
        %v390 = vld [vmem:[%s384 + $0x28] sm:$0xff]
        %v391 = vld [vmem:[%s384 + $0x30] sm:$0xff]
        %v392 = vld [vmem:[%s384 + $0x38] sm:$0xff]
        %v393 = vld [vmem:[%s384 + $0x40] sm:$0xff]
        %v394 = vld [vmem:[%s384 + $0x48] sm:$0xff]
        %v395 = vld [vmem:[%s384 + $0x50] sm:$0xff]
        %v396 = vld [vmem:[%s384 + $0x58] sm:$0xff]
        %v397 = vld [vmem:[%s384 + $0x60] sm:$0xff]
        %v398 = vld [vmem:[%s384 + $0x68] sm:$0xff]
        %v399 = vld [vmem:[%s384 + $0x70] sm:$0xff]
        %v400 = vld [vmem:[%s384 + $0x78] sm:$0xff]
        %v401 = vld [vmem:[%s384 + $0x80] sm:$0xff]
        %v402 = vld [vmem:[%s384 + $0x88] sm:$0xff]
        %v403 = vld [vmem:[%s384 + $0x90] sm:$0xff]
        %v404 = vld [vmem:[%s384 + $0x98] sm:$0xff]
        %v405 = vld [vmem:[%s384 + $0xa0] sm:$0xff]
        %v406 = vld [vmem:[%s384 + $0xa8] sm:$0xff]
        %v407 = vld [vmem:[%s384 + $0xb0] sm:$0xff]
        %v408 = vld [vmem:[%s384 + $0xb8] sm:$0xff]
        %v409 = vld [vmem:[%s384 + $0xc0] sm:$0xf]
        %v410 = vld [vmem:[%s1] sm:$0xff]
        %v411 = vld [vmem:[%s1 + $0x8] sm:$0xff]
        %v412 = vld [vmem:[%s1 + $0x10] sm:$0xff]
        %v413 = vld [vmem:[%s1 + $0x18] sm:$0xff]
        %v414 = vld [vmem:[%s2] sm:$0x1]
        %v416 = vlaneseq
        %v417 = vshrl.u32 %v416, 7
        %v418 = vsub.s32 0, %v417
        %v419 = vrot.slane %v414, %v418
        %vm421 = vcmask 261120
        %v423 = vsel %vm421, %v385, 0
        %v426 = vsel %vm421, %v386, 0
        %v429 = vsel %vm421, %v387, 0
        %v432 = vsel %vm421, %v388, 0
        %v435 = vsel %vm421, %v389, 0
        %v438 = vsel %vm421, %v390, 0
        %v441 = vsel %vm421, %v391, 0
        %v444 = vsel %vm421, %v392, 0
        %v447 = vsel %vm421, %v393, 0
        %v450 = vsel %vm421, %v394, 0
        %v453 = vsel %vm421, %v395, 0
        %v456 = vsel %vm421, %v396, 0
        %v459 = vsel %vm421, %v397, 0
        %v462 = vsel %vm421, %v398, 0
        %v465 = vsel %vm421, %v399, 0
        %v468 = vsel %vm421, %v400, 0
        %v471 = vsel %vm421, %v401, 0
        %v474 = vsel %vm421, %v402, 0
        %v477 = vsel %vm421, %v403, 0
        %v480 = vsel %vm421, %v404, 0
        %v483 = vsel %vm421, %v405, 0
        %v486 = vsel %vm421, %v406, 0
        %v489 = vsel %vm421, %v407, 0
        %v492 = vsel %vm421, %v408, 0
        %v495 = vsel %vm421, %v409, 0
        %497 = vmatprep.subr.mxu0 0.0
        %498 = vmatpush1.msra.mxu0 %v410
        %499 = vmatprep.subr.mxu0 0.0
        %500 = vmatpush1.msra.mxu0 %v411
        %501 = vmatprep.subr.mxu0 0.0
        %502 = vmatpush1.msra.mxu0 %v412
        %503 = vmatprep.subr.mxu0 0.0
        %504 = vmatpush1.msra.mxu0 %v413
        %505 = vmatprep.subr.mxu0 0.0
        %506 = vmatpush1.msra.mxu0 0.0
        %507 = vmatprep.subr.mxu0 0.0
        %508 = vmatpush1.msra.mxu0 0.0
        %509 = vmatprep.subr.mxu0 0.0
        %510 = vmatpush1.msra.mxu0 0.0
        %511 = vmatprep.subr.mxu0 0.0
        %512 = vmatpush1.msra.mxu0 0.0
        %513 = vmatprep.subr.mxu0 0.0
        %514 = vmatpush1.msra.mxu0 0.0
        %515 = vmatprep.subr.mxu0 0.0
        %516 = vmatpush1.msra.mxu0 0.0
        %517 = vmatprep.subr.mxu0 0.0
        %518 = vmatpush1.msra.mxu0 0.0
        %519 = vmatprep.subr.mxu0 0.0
        %520 = vmatpush1.msra.mxu0 0.0
        %521 = vmatprep.subr.mxu0 0.0
        %522 = vmatpush1.msra.mxu0 0.0
        %523 = vmatprep.subr.mxu0 0.0
        %524 = vmatpush1.msra.mxu0 0.0
        %525 = vmatprep.subr.mxu0 0.0
        %526 = vmatpush1.msra.mxu0 0.0
        %527 = vmatprep.subr.mxu0 0.0
        %528 = vmatpush1.msra.mxu0 0.0
        %529 = vmatprep.subr.mxu0 0.0
        %530 = vmatpush1.msra.mxu0 0.0
        %531 = vmatprep.subr.mxu0 0.0
        %532 = vmatpush1.msra.mxu0 0.0
        %533 = vmatprep.subr.mxu0 0.0
        %534 = vmatpush1.msra.mxu0 0.0
        %535 = vmatprep.subr.mxu0 0.0
        %536 = vmatpush1.msra.mxu0 0.0
        %537 = vmatprep.subr.mxu0 0.0
        %538 = vmatpush1.msra.mxu0 0.0
        %539 = vmatprep.subr.mxu0 0.0
        %540 = vmatpush1.msra.mxu0 0.0
        %541 = vmatprep.subr.mxu0 0.0
        %542 = vmatpush1.msra.mxu0 0.0
        %543 = vmatprep.subr.mxu0 0.0
        %544 = vmatpush1.msra.mxu0 0.0
        %545 = vmatprep.subr.mxu0 0.0
        %546 = vmatpush1.msra.mxu0 0.0
        %547 = vmatprep.subr.mxu0 0.0
        %548 = vmatpush1.msra.mxu0 0.0
        %549 = vmatprep.subr.mxu0 0.0
        %550 = vmatpush1.msra.mxu0 0.0
        %551 = vmatprep.subr.mxu0 0.0
        %552 = vmatpush1.msra.mxu0 0.0
        %553 = vmatprep.subr.mxu0 0.0
        %554 = vmatpush1.msra.mxu0 0.0
        %555 = vmatprep.subr.mxu0 0.0
        %556 = vmatpush1.msra.mxu0 0.0
        %557 = vmatprep.subr.mxu0 0.0
        %558 = vmatpush1.msra.mxu0 0.0
        %559 = vmatprep.subr.mxu0 0.0
        %560 = vmatpush1.msra.mxu0 0.0
        %561 = vmatprep.mubr.f32.mxu0 0.0
        %562 = vmatmul.mubr.f32.gmra.mrb[0].mxu0 %v423
        %v563 = vpop.f32.mrb[0].mxu0
        %v564 = vadd.f32 %v419, %v563
        %v565 = vpop.f32.mrb[0].mxu0
        %566 = vmatprep.mubr.f32.mxu0 0.0
        %567 = vmatmul.mubr.f32.gmra.mrb[0].mxu0 %v426
        %v568 = vpop.f32.mrb[0].mxu0
        %v569 = vadd.f32 %v419, %v568
        %v570 = vpop.f32.mrb[0].mxu0
        %571 = vmatprep.mubr.f32.mxu0 0.0
        %572 = vmatmul.mubr.f32.gmra.mrb[0].mxu0 %v429
        %v573 = vpop.f32.mrb[0].mxu0
        %v574 = vadd.f32 %v419, %v573
        %v575 = vpop.f32.mrb[0].mxu0
        %576 = vmatprep.mubr.f32.mxu0 0.0
        %577 = vmatmul.mubr.f32.gmra.mrb[0].mxu0 %v432
        %v578 = vpop.f32.mrb[0].mxu0
        %v579 = vadd.f32 %v419, %v578
        %v580 = vpop.f32.mrb[0].mxu0
        %581 = vmatprep.mubr.f32.mxu0 0.0
        %582 = vmatmul.mubr.f32.gmra.mrb[0].mxu0 %v435
        %v583 = vpop.f32.mrb[0].mxu0
        %v584 = vadd.f32 %v419, %v583
        %v585 = vpop.f32.mrb[0].mxu0
        %586 = vmatprep.mubr.f32.mxu0 0.0
        %587 = vmatmul.mubr.f32.gmra.mrb[0].mxu0 %v438
        %v588 = vpop.f32.mrb[0].mxu0
        %v589 = vadd.f32 %v419, %v588
        %v590 = vpop.f32.mrb[0].mxu0
        %591 = vmatprep.mubr.f32.mxu0 0.0
        %592 = vmatmul.mubr.f32.gmra.mrb[0].mxu0 %v441
        %v593 = vpop.f32.mrb[0].mxu0
        %v594 = vadd.f32 %v419, %v593
        %v595 = vpop.f32.mrb[0].mxu0
        %596 = vmatprep.mubr.f32.mxu0 0.0
        %597 = vmatmul.mubr.f32.gmra.mrb[0].mxu0 %v444
        %v598 = vpop.f32.mrb[0].mxu0
        %v599 = vadd.f32 %v419, %v598
        %v600 = vpop.f32.mrb[0].mxu0
        %601 = vmatprep.mubr.f32.mxu0 0.0
        %602 = vmatmul.mubr.f32.gmra.mrb[0].mxu0 %v447
        %v603 = vpop.f32.mrb[0].mxu0
        %v604 = vadd.f32 %v419, %v603
        %v605 = vpop.f32.mrb[0].mxu0
        %606 = vmatprep.mubr.f32.mxu0 0.0
        %607 = vmatmul.mubr.f32.gmra.mrb[0].mxu0 %v450
        %v608 = vpop.f32.mrb[0].mxu0
        %v609 = vadd.f32 %v419, %v608
        %v610 = vpop.f32.mrb[0].mxu0
        %611 = vmatprep.mubr.f32.mxu0 0.0
        %612 = vmatmul.mubr.f32.gmra.mrb[0].mxu0 %v453
        %v613 = vpop.f32.mrb[0].mxu0
        %v614 = vadd.f32 %v419, %v613
        %v615 = vpop.f32.mrb[0].mxu0
        %616 = vmatprep.mubr.f32.mxu0 0.0
        %617 = vmatmul.mubr.f32.gmra.mrb[0].mxu0 %v456
        %v618 = vpop.f32.mrb[0].mxu0
        %v619 = vadd.f32 %v419, %v618
        %v620 = vpop.f32.mrb[0].mxu0
        %621 = vmatprep.mubr.f32.mxu0 0.0
        %622 = vmatmul.mubr.f32.gmra.mrb[0].mxu0 %v459
        %v623 = vpop.f32.mrb[0].mxu0
        %v624 = vadd.f32 %v419, %v623
        %v625 = vpop.f32.mrb[0].mxu0
        %626 = vmatprep.mubr.f32.mxu0 0.0
        %627 = vmatmul.mubr.f32.gmra.mrb[0].mxu0 %v462
        %v628 = vpop.f32.mrb[0].mxu0
        %v629 = vadd.f32 %v419, %v628
        %v630 = vpop.f32.mrb[0].mxu0
        %631 = vmatprep.mubr.f32.mxu0 0.0
        %632 = vmatmul.mubr.f32.gmra.mrb[0].mxu0 %v465
        %v633 = vpop.f32.mrb[0].mxu0
        %v634 = vadd.f32 %v419, %v633
        %v635 = vpop.f32.mrb[0].mxu0
        %636 = vmatprep.mubr.f32.mxu0 0.0
        %637 = vmatmul.mubr.f32.gmra.mrb[0].mxu0 %v468
        %v638 = vpop.f32.mrb[0].mxu0
        %v639 = vadd.f32 %v419, %v638
        %v640 = vpop.f32.mrb[0].mxu0
        %641 = vmatprep.mubr.f32.mxu0 0.0
        %642 = vmatmul.mubr.f32.gmra.mrb[0].mxu0 %v471
        %v643 = vpop.f32.mrb[0].mxu0
        %v644 = vadd.f32 %v419, %v643
        %v645 = vpop.f32.mrb[0].mxu0
        %646 = vmatprep.mubr.f32.mxu0 0.0
        %647 = vmatmul.mubr.f32.gmra.mrb[0].mxu0 %v474
        %v648 = vpop.f32.mrb[0].mxu0
        %v649 = vadd.f32 %v419, %v648
        %v650 = vpop.f32.mrb[0].mxu0
        %651 = vmatprep.mubr.f32.mxu0 0.0
        %652 = vmatmul.mubr.f32.gmra.mrb[0].mxu0 %v477
        %v653 = vpop.f32.mrb[0].mxu0
        %v654 = vadd.f32 %v419, %v653
        %v655 = vpop.f32.mrb[0].mxu0
        %656 = vmatprep.mubr.f32.mxu0 0.0
        %657 = vmatmul.mubr.f32.gmra.mrb[0].mxu0 %v480
        %v658 = vpop.f32.mrb[0].mxu0
        %v659 = vadd.f32 %v419, %v658
        %v660 = vpop.f32.mrb[0].mxu0
        %661 = vmatprep.mubr.f32.mxu0 0.0
        %662 = vmatmul.mubr.f32.gmra.mrb[0].mxu0 %v483
        %v663 = vpop.f32.mrb[0].mxu0
        %v664 = vadd.f32 %v419, %v663
        %v665 = vpop.f32.mrb[0].mxu0
        %666 = vmatprep.mubr.f32.mxu0 0.0
        %667 = vmatmul.mubr.f32.gmra.mrb[0].mxu0 %v486
        %v668 = vpop.f32.mrb[0].mxu0
        %v669 = vadd.f32 %v419, %v668
        %v670 = vpop.f32.mrb[0].mxu0
        %671 = vmatprep.mubr.f32.mxu0 0.0
        %672 = vmatmul.mubr.f32.gmra.mrb[0].mxu0 %v489
        %v673 = vpop.f32.mrb[0].mxu0
        %v674 = vadd.f32 %v419, %v673
        %v675 = vpop.f32.mrb[0].mxu0
        %676 = vmatprep.mubr.f32.mxu0 0.0
        %677 = vmatmul.mubr.f32.gmra.mrb[0].mxu0 %v492
        %v678 = vpop.f32.mrb[0].mxu0
        %v679 = vadd.f32 %v419, %v678
        %v680 = vpop.f32.mrb[0].mxu0
        %681 = vmatprep.mubr.f32.mxu0 0.0
        %682 = vmatmul.mubr.f32.gmra.mrb[0].mxu0 %v495
        %v683 = vpop.f32.mrb[0].mxu0
        %v684 = vadd.f32 %v419, %v683
        %v685 = vpop.f32.mrb[0].mxu0
        %686 = vdwg.mxu0
        %v687 = vmax.f32 %v564, 0.0
        %v688 = vmax.f32 %v569, 0.0
        %v689 = vmax.f32 %v574, 0.0
        %v690 = vmax.f32 %v579, 0.0
        %v691 = vmax.f32 %v584, 0.0
        %v692 = vmax.f32 %v589, 0.0
        %v693 = vmax.f32 %v594, 0.0
        %v694 = vmax.f32 %v599, 0.0
        %v695 = vmax.f32 %v604, 0.0
        %v696 = vmax.f32 %v609, 0.0
        %v697 = vmax.f32 %v614, 0.0
        %v698 = vmax.f32 %v619, 0.0
        %v699 = vmax.f32 %v624, 0.0
        %v700 = vmax.f32 %v629, 0.0
        %v701 = vmax.f32 %v634, 0.0
        %v702 = vmax.f32 %v639, 0.0
        %v703 = vmax.f32 %v644, 0.0
        %v704 = vmax.f32 %v649, 0.0
        %v705 = vmax.f32 %v654, 0.0
        %v706 = vmax.f32 %v659, 0.0
        %v707 = vmax.f32 %v664, 0.0
        %v708 = vmax.f32 %v669, 0.0
        %v709 = vmax.f32 %v674, 0.0
        %v710 = vmax.f32 %v679, 0.0
        %v711 = vmax.f32 %v684, 0.0
        %vm737 = vcmask 1046528
        %v738 = vrot.slane %v687, 1
        %v739 = vrot.slane %v688, 1
        %v740 = vsel %vm737, %v738, %v739
        %v741 = vrot.slane %v689, 1
        %v742 = vsel %vm737, %v739, %v741
        %v743 = vrot.slane %v690, 1
        %v744 = vsel %vm737, %v741, %v743
        %v745 = vrot.slane %v691, 1
        %v746 = vsel %vm737, %v743, %v745
        %v747 = vrot.slane %v692, 1
        %v748 = vsel %vm737, %v745, %v747
        %v749 = vrot.slane %v693, 1
        %v750 = vsel %vm737, %v747, %v749
        %v751 = vrot.slane %v694, 1
        %v752 = vsel %vm737, %v749, %v751
        %v753 = vrot.slane %v695, 1
        %v754 = vsel %vm737, %v751, %v753
        %v755 = vrot.slane %v696, 1
        %v756 = vsel %vm737, %v753, %v755
        %v757 = vrot.slane %v697, 1
        %v758 = vsel %vm737, %v755, %v757
        %v759 = vrot.slane %v698, 1
        %v760 = vsel %vm737, %v757, %v759
        %v761 = vrot.slane %v699, 1
        %v762 = vsel %vm737, %v759, %v761
        %v763 = vrot.slane %v700, 1
        %v764 = vsel %vm737, %v761, %v763
        %v765 = vrot.slane %v701, 1
        %v766 = vsel %vm737, %v763, %v765
        %v767 = vrot.slane %v702, 1
        %v768 = vsel %vm737, %v765, %v767
        %v769 = vrot.slane %v703, 1
        %v770 = vsel %vm737, %v767, %v769
        %v771 = vrot.slane %v704, 1
        %v772 = vsel %vm737, %v769, %v771
        %v773 = vrot.slane %v705, 1
        %v774 = vsel %vm737, %v771, %v773
        %v775 = vrot.slane %v706, 1
        %v776 = vsel %vm737, %v773, %v775
        %v777 = vrot.slane %v707, 1
        %v778 = vsel %vm737, %v775, %v777
        %v779 = vrot.slane %v708, 1
        %v780 = vsel %vm737, %v777, %v779
        %v781 = vrot.slane %v709, 1
        %v782 = vsel %vm737, %v779, %v781
        %v783 = vrot.slane %v710, 1
        %v784 = vsel %vm737, %v781, %v783
        %v785 = vrot.slane %v711, 1
        %v786 = vsel %vm737, %v783, %v785
        %v812 = vmax.f32 %v687, %v740
        %v813 = vmax.f32 %v688, %v742
        %v814 = vmax.f32 %v689, %v744
        %v815 = vmax.f32 %v690, %v746
        %v816 = vmax.f32 %v691, %v748
        %v817 = vmax.f32 %v692, %v750
        %v818 = vmax.f32 %v693, %v752
        %v819 = vmax.f32 %v694, %v754
        %v820 = vmax.f32 %v695, %v756
        %v821 = vmax.f32 %v696, %v758
        %v822 = vmax.f32 %v697, %v760
        %v823 = vmax.f32 %v698, %v762
        %v824 = vmax.f32 %v699, %v764
        %v825 = vmax.f32 %v700, %v766
        %v826 = vmax.f32 %v701, %v768
        %v827 = vmax.f32 %v702, %v770
        %v828 = vmax.f32 %v703, %v772
        %v829 = vmax.f32 %v704, %v774
        %v830 = vmax.f32 %v705, %v776
        %v831 = vmax.f32 %v706, %v778
        %v832 = vmax.f32 %v707, %v780
        %v833 = vmax.f32 %v708, %v782
        %v834 = vmax.f32 %v709, %v784
        %v835 = vmax.f32 %v710, %v786
        %v836 = vmax.f32 %v711, %v785
        %vm861 = vcmask 1041408
        %v862 = vrot.slane %v813, 6
        %v863 = vrot.slane %v814, 6
        %v864 = vsel %vm861, %v862, %v863
        %v865 = vrot.slane %v815, 6
        %v866 = vsel %vm861, %v863, %v865
        %v867 = vrot.slane %v816, 6
        %v868 = vsel %vm861, %v865, %v867
        %v869 = vrot.slane %v817, 6
        %v870 = vsel %vm861, %v867, %v869
        %v871 = vrot.slane %v818, 6
        %v872 = vsel %vm861, %v869, %v871
        %v873 = vrot.slane %v819, 6
        %v874 = vsel %vm861, %v871, %v873
        %v875 = vrot.slane %v820, 6
        %v876 = vsel %vm861, %v873, %v875
        %v877 = vrot.slane %v821, 6
        %v878 = vsel %vm861, %v875, %v877
        %v879 = vrot.slane %v822, 6
        %v880 = vsel %vm861, %v877, %v879
        %v881 = vrot.slane %v823, 6
        %v882 = vsel %vm861, %v879, %v881
        %v883 = vrot.slane %v824, 6
        %v884 = vsel %vm861, %v881, %v883
        %v885 = vrot.slane %v825, 6
        %v886 = vsel %vm861, %v883, %v885
        %v887 = vrot.slane %v826, 6
        %v888 = vsel %vm861, %v885, %v887
        %v889 = vrot.slane %v827, 6
        %v890 = vsel %vm861, %v887, %v889
        %v891 = vrot.slane %v828, 6
        %v892 = vsel %vm861, %v889, %v891
        %v893 = vrot.slane %v829, 6
        %v894 = vsel %vm861, %v891, %v893
        %v895 = vrot.slane %v830, 6
        %v896 = vsel %vm861, %v893, %v895
        %v897 = vrot.slane %v831, 6
        %v898 = vsel %vm861, %v895, %v897
        %v899 = vrot.slane %v832, 6
        %v900 = vsel %vm861, %v897, %v899
        %v901 = vrot.slane %v833, 6
        %v902 = vsel %vm861, %v899, %v901
        %v903 = vrot.slane %v834, 6
        %v904 = vsel %vm861, %v901, %v903
        %v905 = vrot.slane %v835, 6
        %v906 = vsel %vm861, %v903, %v905
        %v907 = vrot.slane %v836, 6
        %v908 = vsel %vm861, %v905, %v907
        %v932 = vmax.f32 %v812, %v864
        %v933 = vmax.f32 %v813, %v866
        %v934 = vmax.f32 %v814, %v868
        %v935 = vmax.f32 %v815, %v870
        %v936 = vmax.f32 %v816, %v872
        %v937 = vmax.f32 %v817, %v874
        %v938 = vmax.f32 %v818, %v876
        %v939 = vmax.f32 %v819, %v878
        %v940 = vmax.f32 %v820, %v880
        %v941 = vmax.f32 %v821, %v882
        %v942 = vmax.f32 %v822, %v884
        %v943 = vmax.f32 %v823, %v886
        %v944 = vmax.f32 %v824, %v888
        %v945 = vmax.f32 %v825, %v890
        %v946 = vmax.f32 %v826, %v892
        %v947 = vmax.f32 %v827, %v894
        %v948 = vmax.f32 %v828, %v896
        %v949 = vmax.f32 %v829, %v898
        %v950 = vmax.f32 %v830, %v900
        %v951 = vmax.f32 %v831, %v902
        %v952 = vmax.f32 %v832, %v904
        %v953 = vmax.f32 %v833, %v906
        %v954 = vmax.f32 %v834, %v908
        %v955 = vld [vmem:[%s9] sm:$0xff]
        %v956 = vld [vmem:[%s9 + $0x8] sm:$0xff]
        %v957 = vld [vmem:[%s9 + $0x10] sm:$0xff]
        %v958 = vld [vmem:[%s9 + $0x18] sm:$0xff]
        %v959 = vld [vmem:[%s9 + $0x20] sm:$0xff]
        %v960 = vld [vmem:[%s9 + $0x28] sm:$0xff]
        %v961 = vld [vmem:[%s9 + $0x30] sm:$0xff]
        %v962 = vld [vmem:[%s9 + $0x38] sm:$0xff]
        %v963 = vld [vmem:[%s9 + $0x40] sm:$0xff]
        %v964 = vld [vmem:[%s9 + $0x48] sm:$0xff]
        %v965 = vld [vmem:[%s9 + $0x50] sm:$0xff]
        %v966 = vld [vmem:[%s9 + $0x58] sm:$0xff]
        %v967 = vld [vmem:[%s9 + $0x60] sm:$0x1]
        %v968 = vld [vmem:[%s9 + $0x68] sm:$0x1]
        %vm969 = vcmask 433152
        %v971 = vsel %vm969, %v956, 0
        %v974 = vsel %vm969, %v958, 0
        %v977 = vsel %vm969, %v960, 0
        %v980 = vsel %vm969, %v962, 0
        %v983 = vsel %vm969, %v964, 0
        %v986 = vsel %vm969, %v966, 0
        %v989 = vsel %vm969, %v968, 0
        %vm991 = vcmask 1044480
        %v993 = vsel %vm991, %v954, 0
        %995 = vmatprep.subr.mxu0 0.0
        %996 = vmatpush1.msra.mxu0 %v932
        %997 = vmatprep.subr.mxu0 0.0
        %998 = vmatpush1.msra.mxu0 %v933
        %999 = vmatprep.subr.mxu0 0.0
        %1000 = vmatpush1.msra.mxu0 %v934
        %1001 = vmatprep.subr.mxu0 0.0
        %1002 = vmatpush1.msra.mxu0 %v935
        %1003 = vmatprep.subr.mxu0 0.0
        %1004 = vmatpush1.msra.mxu0 %v936
        %1005 = vmatprep.subr.mxu0 0.0
        %1006 = vmatpush1.msra.mxu0 %v937
        %1007 = vmatprep.subr.mxu0 0.0
        %1008 = vmatpush1.msra.mxu0 %v938
        %1009 = vmatprep.subr.mxu0 0.0
        %1010 = vmatpush1.msra.mxu0 %v939
        %1011 = vmatprep.subr.mxu0 0.0
        %1012 = vmatpush1.msra.mxu0 %v940
        %1013 = vmatprep.subr.mxu0 0.0
        %1014 = vmatpush1.msra.mxu0 %v941
        %1015 = vmatprep.subr.mxu0 0.0
        %1016 = vmatpush1.msra.mxu0 %v942
        %1017 = vmatprep.subr.mxu0 0.0
        %1018 = vmatpush1.msra.mxu0 %v943
        %1019 = vmatprep.subr.mxu0 0.0
        %1020 = vmatpush1.msra.mxu0 %v944
        %1021 = vmatprep.subr.mxu0 0.0
        %1022 = vmatpush1.msra.mxu0 %v945
        %1023 = vmatprep.subr.mxu0 0.0
        %1024 = vmatpush1.msra.mxu0 %v946
        %1025 = vmatprep.subr.mxu0 0.0
        %1026 = vmatpush1.msra.mxu0 %v947
        %1027 = vmatprep.subr.mxu0 0.0
        %1028 = vmatpush1.msra.mxu0 %v948
        %1029 = vmatprep.subr.mxu0 0.0
        %1030 = vmatpush1.msra.mxu0 %v949
        %1031 = vmatprep.subr.mxu0 0.0
        %1032 = vmatpush1.msra.mxu0 %v950
        %1033 = vmatprep.subr.mxu0 0.0
        %1034 = vmatpush1.msra.mxu0 %v951
        %1035 = vmatprep.subr.mxu0 0.0
        %1036 = vmatpush1.msra.mxu0 %v952
        %1037 = vmatprep.subr.mxu0 0.0
        %1038 = vmatpush1.msra.mxu0 %v953
        %1039 = vmatprep.subr.mxu0 0.0
        %1040 = vmatpush1.msra.mxu0 %v993
        %1041 = vmatprep.subr.mxu0 0.0
        %1042 = vmatpush1.msra.mxu0 0.0
        %1043 = vmatprep.subr.mxu0 0.0
        %1044 = vmatpush1.msra.mxu0 0.0
        %1045 = vmatprep.subr.mxu0 0.0
        %1046 = vmatpush1.msra.mxu0 0.0
        %1047 = vmatprep.subr.mxu0 0.0
        %1048 = vmatpush1.msra.mxu0 0.0
        %1049 = vmatprep.subr.mxu0 0.0
        %1050 = vmatpush1.msra.mxu0 0.0
        %1051 = vmatprep.subr.mxu0 0.0
        %1052 = vmatpush1.msra.mxu0 0.0
        %1053 = vmatprep.subr.mxu0 0.0
        %1054 = vmatpush1.msra.mxu0 0.0
        %1055 = vmatprep.subr.mxu0 0.0
        %1056 = vmatpush1.msra.mxu0 0.0
        %1057 = vmatprep.subr.mxu0 0.0
        %1058 = vmatpush1.msra.mxu0 0.0
        %1059 = vmatprep.mubr.f32.mxu0 %v971
        %1060 = vmatmul.mubr.f32.gmra.mrb[0].mxu0 %v955
        %v1061 = vpop.f32.mrb[0].mxu0
        %v1062 = vadd.f32 0.0, %v1061
        %v1063 = vpop.f32.mrb[0].mxu0
        %1064 = vmatprep.mubr.f32.mxu0 %v974
        %1065 = vmatmul.mubr.f32.gmra.mrb[0].mxu0 %v957
        %v1066 = vpop.f32.mrb[0].mxu0
        %v1067 = vadd.f32 0.0, %v1066
        %v1068 = vpop.f32.mrb[0].mxu0
        %1069 = vmatprep.mubr.f32.mxu0 %v977
        %1070 = vmatmul.mubr.f32.gmra.mrb[0].mxu0 %v959
        %v1071 = vpop.f32.mrb[0].mxu0
        %v1072 = vadd.f32 0.0, %v1071
        %v1073 = vpop.f32.mrb[0].mxu0
        %1074 = vmatprep.mubr.f32.mxu0 %v980
        %1075 = vmatmul.mubr.f32.gmra.mrb[0].mxu0 %v961
        %v1076 = vpop.f32.mrb[0].mxu0
        %v1077 = vadd.f32 0.0, %v1076
        %v1078 = vpop.f32.mrb[0].mxu0
        %1079 = vmatprep.mubr.f32.mxu0 %v983
        %1080 = vmatmul.mubr.f32.gmra.mrb[0].mxu0 %v963
        %v1081 = vpop.f32.mrb[0].mxu0
        %v1082 = vadd.f32 0.0, %v1081
        %v1083 = vpop.f32.mrb[0].mxu0
        %1084 = vmatprep.mubr.f32.mxu0 %v986
        %1085 = vmatmul.mubr.f32.gmra.mrb[0].mxu0 %v965
        %v1086 = vpop.f32.mrb[0].mxu0
        %v1087 = vadd.f32 0.0, %v1086
        %v1088 = vpop.f32.mrb[0].mxu0
        %1089 = vmatprep.mubr.f32.mxu0 %v989
        %1090 = vmatmul.mubr.f32.gmra.mrb[0].mxu0 %v967
        %v1091 = vpop.f32.mrb[0].mxu0
        %v1092 = vadd.f32 0.0, %v1091
        %v1093 = vpop.f32.mrb[0].mxu0
        %1094 = vdwg.mxu0
        %v1100 = vrot.slane %v1062, 1
        %v1101 = vrot.slane %v1067, 1
        %v1102 = vsel %vm737, %v1100, %v1101
        %v1103 = vrot.slane %v1072, 1
        %v1104 = vsel %vm737, %v1101, %v1103
        %v1105 = vrot.slane %v1077, 1
        %v1106 = vsel %vm737, %v1103, %v1105
        %v1107 = vrot.slane %v1082, 1
        %v1108 = vsel %vm737, %v1105, %v1107
        %1109 = vrot.lane.b32.xlu0 %v1102, 64
        %v1110 = vpop.permute.xlu0 %1109
        %1111 = vrot.lane.b32.xlu0 %v1104, 64
        %v1112 = vpop.permute.xlu0 %1111
        %1113 = vrot.lane.b32.xlu0 %v1106, 64
        %v1114 = vpop.permute.xlu0 %1113
        %1115 = vrot.lane.b32.xlu0 %v1108, 64
        %v1116 = vpop.permute.xlu0 %1115
        %1117 = vrot.lane.b32.xlu0 %v1107, 64
        %v1118 = vpop.permute.xlu0 %1117
        %vm1124 = vcmask 1045504
        %v1125 = vrot.slane %v1062, 2
        %v1126 = vrot.slane %v1067, 2
        %v1127 = vsel %vm1124, %v1125, %v1126
        %v1128 = vrot.slane %v1072, 2
        %v1129 = vsel %vm1124, %v1126, %v1128
        %v1130 = vrot.slane %v1077, 2
        %v1131 = vsel %vm1124, %v1128, %v1130
        %v1132 = vrot.slane %v1082, 2
        %v1133 = vsel %vm1124, %v1130, %v1132
        %vm1139 = vcmask 1040384
        %v1140 = vrot.slane %v1062, 7
        %v1141 = vrot.slane %v1067, 7
        %v1142 = vsel %vm1139, %v1140, %v1141
        %v1143 = vrot.slane %v1072, 7
        %v1144 = vsel %vm1139, %v1141, %v1143
        %v1145 = vrot.slane %v1077, 7
        %v1146 = vsel %vm1139, %v1143, %v1145
        %v1147 = vrot.slane %v1082, 7
        %v1148 = vsel %vm1139, %v1145, %v1147
        %1149 = vrot.lane.b32.xlu0 %v1142, 64
        %v1150 = vpop.permute.xlu0 %1149
        %1151 = vrot.lane.b32.xlu0 %v1144, 64
        %v1152 = vpop.permute.xlu0 %1151
        %1153 = vrot.lane.b32.xlu0 %v1146, 64
        %v1154 = vpop.permute.xlu0 %1153
        %1155 = vrot.lane.b32.xlu0 %v1148, 64
        %v1156 = vpop.permute.xlu0 %1155
        %1157 = vrot.lane.b32.xlu0 %v1147, 64
        %v1158 = vpop.permute.xlu0 %1157
        %v1165 = vrot.slane %v1087, 1
        %v1166 = vsel %vm737, %v1107, %v1165
        %1167 = vrot.lane.b32.xlu0 %v1166, 64
        %v1168 = vpop.permute.xlu0 %1167
        %1169 = vrot.lane.b32.xlu0 %v1165, 64
        %v1170 = vpop.permute.xlu0 %1169
        %v1173 = vrot.slane %v1067, 6
        %v1174 = vrot.slane %v1072, 6
        %v1175 = vsel %vm861, %v1173, %v1174
        %v1176 = vrot.slane %v1077, 6
        %v1177 = vsel %vm861, %v1174, %v1176
        %v1178 = vrot.slane %v1082, 6
        %v1179 = vsel %vm861, %v1176, %v1178
        %v1180 = vrot.slane %v1087, 6
        %v1181 = vsel %vm861, %v1178, %v1180
        %v1187 = vrot.slane %v1087, 7
        %v1188 = vsel %vm1139, %v1147, %v1187
        %1189 = vrot.lane.b32.xlu0 %v1188, 64
        %v1190 = vpop.permute.xlu0 %1189
        %1191 = vrot.lane.b32.xlu0 %v1187, 64
        %v1192 = vpop.permute.xlu0 %1191
        %vm1195 = vcmask 523264
        %v1196 = vsel %vm1195, %v1062, %v1110
        %v1197 = vsel %vm1195, %v1067, %v1112
        %v1198 = vsel %vm1195, %v1072, %v1114
        %v1199 = vsel %vm1195, %v1077, %v1116
        %v1200 = vsel %vm1195, %v1082, %v1118
        %v1201 = vsel %vm1195, %v1127, %v1150
        %v1202 = vsel %vm1195, %v1129, %v1152
        %v1203 = vsel %vm1195, %v1131, %v1154
        %v1204 = vsel %vm1195, %v1133, %v1156
        %v1205 = vsel %vm1195, %v1132, %v1158
        %v1206 = vsel %vm1195, %v1082, %v1168
        %v1207 = vsel %vm1195, %v1087, %v1170
        %v1208 = vsel %vm1195, %v1175, %v1152
        %v1209 = vsel %vm1195, %v1177, %v1154
        %v1210 = vsel %vm1195, %v1179, %v1156
        %v1211 = vsel %vm1195, %v1181, %v1190
        %v1212 = vsel %vm1195, %v1180, %v1192
        %v1213 = vld [vmem:[%s3] sm:$0xff]
        %v1214 = vld [vmem:[%s3 + $0x8] sm:$0xff]
        %v1215 = vld [vmem:[%s3 + $0x10] sm:$0xff]
        %v1216 = vld [vmem:[%s3 + $0x18] sm:$0xff]
        %v1217 = vld [vmem:[%s3 + $0x20] sm:$0xff]
        %v1218 = vld [vmem:[%s3 + $0x28] sm:$0xff]
        %v1219 = vld [vmem:[%s3 + $0x30] sm:$0xff]
        %v1220 = vld [vmem:[%s3 + $0x38] sm:$0xff]
        %v1221 = vld [vmem:[%s3 + $0x40] sm:$0xff]
        %v1222 = vld [vmem:[%s3 + $0x48] sm:$0xff]
        %v1223 = vld [vmem:[%s3 + $0x50] sm:$0xff]
        %v1224 = vld [vmem:[%s3 + $0x58] sm:$0xff]
        %v1225 = vld [vmem:[%s3 + $0x60] sm:$0xff]
        %v1226 = vld [vmem:[%s3 + $0x68] sm:$0xff]
        %v1227 = vld [vmem:[%s3 + $0x70] sm:$0xff]
        %v1228 = vld [vmem:[%s3 + $0x78] sm:$0xff]
        %v1229 = vld [vmem:[%s3 + $0x80] sm:$0xff]
        %v1230 = vld [vmem:[%s3 + $0x88] sm:$0xff]
        %v1231 = vld [vmem:[%s3 + $0x90] sm:$0xff]
        %v1232 = vld [vmem:[%s3 + $0x98] sm:$0xff]
        %v1233 = vld [vmem:[%s3 + $0xa0] sm:$0xff]
        %v1234 = vld [vmem:[%s3 + $0xa8] sm:$0xff]
        %v1235 = vld [vmem:[%s3 + $0xb0] sm:$0xff]
        %v1236 = vld [vmem:[%s3 + $0xb8] sm:$0xff]
        %v1237 = vld [vmem:[%s3 + $0xc0] sm:$0xff]
        %v1238 = vld [vmem:[%s3 + $0xc8] sm:$0xff]
        %v1239 = vld [vmem:[%s3 + $0xd0] sm:$0xff]
        %v1240 = vld [vmem:[%s3 + $0xd8] sm:$0xff]
        %v1241 = vld [vmem:[%s3 + $0xe0] sm:$0xff]
        %v1242 = vld [vmem:[%s3 + $0xe8] sm:$0xff]
        %v1243 = vld [vmem:[%s3 + $0xf0] sm:$0xff]
        %v1244 = vld [vmem:[%s3 + $0xf8] sm:$0xff]
        %v1245 = vld [vmem:[%s3 + $0x100] sm:$0xff]
        %v1246 = vld [vmem:[%s3 + $0x108] sm:$0xff]
        %v1247 = vld [vmem:[%s3 + $0x110] sm:$0xff]
        %v1248 = vld [vmem:[%s3 + $0x118] sm:$0xff]
        %v1249 = vld [vmem:[%s3 + $0x120] sm:$0xff]
        %v1250 = vld [vmem:[%s3 + $0x128] sm:$0xff]
        %v1251 = vld [vmem:[%s3 + $0x130] sm:$0xff]
        %v1252 = vld [vmem:[%s3 + $0x138] sm:$0xff]
        %v1253 = vld [vmem:[%s3 + $0x140] sm:$0xff]
        %v1254 = vld [vmem:[%s3 + $0x148] sm:$0xff]
        %v1255 = vld [vmem:[%s3 + $0x150] sm:$0xff]
        %v1256 = vld [vmem:[%s3 + $0x158] sm:$0xff]
        %v1257 = vld [vmem:[%s3 + $0x160] sm:$0xff]
        %v1258 = vld [vmem:[%s3 + $0x168] sm:$0xff]
        %v1259 = vld [vmem:[%s3 + $0x170] sm:$0xff]
        %v1260 = vld [vmem:[%s3 + $0x178] sm:$0xff]
        %v1261 = vld [vmem:[%s3 + $0x180] sm:$0xff]
        %v1262 = vld [vmem:[%s3 + $0x188] sm:$0xff]
        %v1263 = vld [vmem:[%s3 + $0x190] sm:$0xff]
        %v1264 = vld [vmem:[%s3 + $0x198] sm:$0xff]
        %v1265 = vld [vmem:[%s3 + $0x1a0] sm:$0xff]
        %v1266 = vld [vmem:[%s3 + $0x1a8] sm:$0xff]
        %v1267 = vld [vmem:[%s3 + $0x1b0] sm:$0xff]
        %v1268 = vld [vmem:[%s3 + $0x1b8] sm:$0xff]
        %v1269 = vld [vmem:[%s3 + $0x1c0] sm:$0xff]
        %v1270 = vld [vmem:[%s3 + $0x1c8] sm:$0xff]
        %v1271 = vld [vmem:[%s3 + $0x1d0] sm:$0xff]
        %v1272 = vld [vmem:[%s3 + $0x1d8] sm:$0xff]
        %v1273 = vld [vmem:[%s3 + $0x1e0] sm:$0xff]
        %v1274 = vld [vmem:[%s3 + $0x1e8] sm:$0xff]
        %v1275 = vld [vmem:[%s3 + $0x1f0] sm:$0xff]
        %v1276 = vld [vmem:[%s3 + $0x1f8] sm:$0xff]
        %v1277 = vld [vmem:[%s3 + $0x200] sm:$0xff]
        %v1278 = vld [vmem:[%s3 + $0x208] sm:$0xff]
        %v1279 = vld [vmem:[%s3 + $0x210] sm:$0xff]
        %v1280 = vld [vmem:[%s3 + $0x218] sm:$0xff]
        %v1281 = vld [vmem:[%s3 + $0x220] sm:$0xff]
        %v1282 = vld [vmem:[%s3 + $0x228] sm:$0xff]
        %v1283 = vld [vmem:[%s3 + $0x230] sm:$0xff]
        %v1284 = vld [vmem:[%s3 + $0x238] sm:$0xff]
        %v1285 = vld [vmem:[%s4] sm:$0x1]
        %v1287 = vlaneseq
        %v1288 = vshrl.u32 %v1287, 7
        %v1289 = vsub.s32 0, %v1288
        %v1290 = vrot.slane %v1285, %v1289
        %v1292 = vsel %vm1195, %v1072, 0
        %v1294 = vsel %vm1195, %v1077, 0
        %v1296 = vsel %vm1195, %v1082, 0
        %v1298 = vsel %vm1195, %v1087, 0
        %v1301 = vsel %vm1195, %v1092, 0
        %1303 = vmatprep.subr.mxu0 0.0
        %1304 = vmatpush1.msra.mxu0 %v1213
        %1305 = vmatprep.subr.mxu0 0.0
        %1306 = vmatpush1.msra.mxu0 %v1214
        %1307 = vmatprep.subr.mxu0 0.0
        %1308 = vmatpush1.msra.mxu0 %v1215
        %1309 = vmatprep.subr.mxu0 0.0
        %1310 = vmatpush1.msra.mxu0 %v1216
        %1311 = vmatprep.subr.mxu0 0.0
        %1312 = vmatpush1.msra.mxu0 %v1217
        %1313 = vmatprep.subr.mxu0 0.0
        %1314 = vmatpush1.msra.mxu0 %v1218
        %1315 = vmatprep.subr.mxu0 0.0
        %1316 = vmatpush1.msra.mxu0 %v1219
        %1317 = vmatprep.subr.mxu0 0.0
        %1318 = vmatpush1.msra.mxu0 %v1220
        %1319 = vmatprep.subr.mxu0 0.0
        %1320 = vmatpush1.msra.mxu0 %v1221
        %1321 = vmatprep.subr.mxu0 0.0
        %1322 = vmatpush1.msra.mxu0 %v1222
        %1323 = vmatprep.subr.mxu0 0.0
        %1324 = vmatpush1.msra.mxu0 %v1223
        %1325 = vmatprep.subr.mxu0 0.0
        %1326 = vmatpush1.msra.mxu0 %v1224
        %1327 = vmatprep.subr.mxu0 0.0
        %1328 = vmatpush1.msra.mxu0 %v1225
        %1329 = vmatprep.subr.mxu0 0.0
        %1330 = vmatpush1.msra.mxu0 %v1226
        %1331 = vmatprep.subr.mxu0 0.0
        %1332 = vmatpush1.msra.mxu0 %v1227
        %1333 = vmatprep.subr.mxu0 0.0
        %1334 = vmatpush1.msra.mxu0 %v1228
        %1335 = vmatprep.subr.mxu0 0.0
        %1336 = vmatpush1.msra.mxu0 %v1229
        %1337 = vmatprep.subr.mxu0 0.0
        %1338 = vmatpush1.msra.mxu0 %v1230
        %1339 = vmatprep.subr.mxu0 0.0
        %1340 = vmatpush1.msra.mxu0 %v1231
        %1341 = vmatprep.subr.mxu0 0.0
        %1342 = vmatpush1.msra.mxu0 %v1232
        %1343 = vmatprep.subr.mxu0 0.0
        %1344 = vmatpush1.msra.mxu0 %v1233
        %1345 = vmatprep.subr.mxu0 0.0
        %1346 = vmatpush1.msra.mxu0 %v1234
        %1347 = vmatprep.subr.mxu0 0.0
        %1348 = vmatpush1.msra.mxu0 %v1235
        %1349 = vmatprep.subr.mxu0 0.0
        %1350 = vmatpush1.msra.mxu0 %v1236
        %1351 = vmatprep.subr.mxu0 0.0
        %1352 = vmatpush1.msra.mxu0 %v1237
        %1353 = vmatprep.subr.mxu0 0.0
        %1354 = vmatpush1.msra.mxu0 %v1238
        %1355 = vmatprep.subr.mxu0 0.0
        %1356 = vmatpush1.msra.mxu0 %v1239
        %1357 = vmatprep.subr.mxu0 0.0
        %1358 = vmatpush1.msra.mxu0 %v1240
        %1359 = vmatprep.subr.mxu0 0.0
        %1360 = vmatpush1.msra.mxu0 %v1241
        %1361 = vmatprep.subr.mxu0 0.0
        %1362 = vmatpush1.msra.mxu0 %v1242
        %1363 = vmatprep.subr.mxu0 0.0
        %1364 = vmatpush1.msra.mxu0 %v1243
        %1365 = vmatprep.subr.mxu0 0.0
        %1366 = vmatpush1.msra.mxu0 %v1244
        %1367 = vmatprep.mubr.f32.mxu0 %v1201
        %1368 = vmatmul.mubr.f32.gmra.mrb[0].mxu0 %v1196
        %v1369 = vpop.f32.mrb[0].mxu0
        %v1370 = vadd.f32 %v1290, %v1369
        %v1371 = vpop.f32.mrb[0].mxu0
        %1372 = vmatprep.mubr.f32.mxu0 %v1202
        %1373 = vmatmul.mubr.f32.gmra.mrb[0].mxu0 %v1197
        %v1374 = vpop.f32.mrb[0].mxu0
        %v1375 = vadd.f32 %v1290, %v1374
        %v1376 = vpop.f32.mrb[0].mxu0
        %1377 = vmatprep.mubr.f32.mxu0 %v1203
        %1378 = vmatmul.mubr.f32.gmra.mrb[0].mxu0 %v1198
        %v1379 = vpop.f32.mrb[0].mxu0
        %v1380 = vadd.f32 %v1290, %v1379
        %v1381 = vpop.f32.mrb[0].mxu0
        %1382 = vmatprep.mubr.f32.mxu0 %v1204
        %1383 = vmatmul.mubr.f32.gmra.mrb[0].mxu0 %v1199
        %v1384 = vpop.f32.mrb[0].mxu0
        %v1385 = vadd.f32 %v1290, %v1384
        %v1386 = vpop.f32.mrb[0].mxu0
        %1387 = vmatprep.mubr.f32.mxu0 %v1205
        %1388 = vmatmul.mubr.f32.gmra.mrb[0].mxu0 %v1200
        %v1389 = vpop.f32.mrb[0].mxu0
        %v1390 = vadd.f32 %v1290, %v1389
        %v1391 = vpop.f32.mrb[0].mxu0
        %1392 = vdwg.mxu0
        %1393 = vmatprep.subr.mxu0 0.0
        %1394 = vmatpush1.msra.mxu0 %v1245
        %1395 = vmatprep.subr.mxu0 0.0
        %1396 = vmatpush1.msra.mxu0 %v1246
        %1397 = vmatprep.subr.mxu0 0.0
        %1398 = vmatpush1.msra.mxu0 %v1247
        %1399 = vmatprep.subr.mxu0 0.0
        %1400 = vmatpush1.msra.mxu0 %v1248
        %1401 = vmatprep.subr.mxu0 0.0
        %1402 = vmatpush1.msra.mxu0 %v1249
        %1403 = vmatprep.subr.mxu0 0.0
        %1404 = vmatpush1.msra.mxu0 %v1250
        %1405 = vmatprep.subr.mxu0 0.0
        %1406 = vmatpush1.msra.mxu0 %v1251
        %1407 = vmatprep.subr.mxu0 0.0
        %1408 = vmatpush1.msra.mxu0 %v1252
        %1409 = vmatprep.subr.mxu0 0.0
        %1410 = vmatpush1.msra.mxu0 %v1253
        %1411 = vmatprep.subr.mxu0 0.0
        %1412 = vmatpush1.msra.mxu0 %v1254
        %1413 = vmatprep.subr.mxu0 0.0
        %1414 = vmatpush1.msra.mxu0 %v1255
        %1415 = vmatprep.subr.mxu0 0.0
        %1416 = vmatpush1.msra.mxu0 %v1256
        %1417 = vmatprep.subr.mxu0 0.0
        %1418 = vmatpush1.msra.mxu0 %v1257
        %1419 = vmatprep.subr.mxu0 0.0
        %1420 = vmatpush1.msra.mxu0 %v1258
        %1421 = vmatprep.subr.mxu0 0.0
        %1422 = vmatpush1.msra.mxu0 %v1259
        %1423 = vmatprep.subr.mxu0 0.0
        %1424 = vmatpush1.msra.mxu0 %v1260
        %1425 = vmatprep.subr.mxu0 0.0
        %1426 = vmatpush1.msra.mxu0 %v1261
        %1427 = vmatprep.subr.mxu0 0.0
        %1428 = vmatpush1.msra.mxu0 %v1262
        %1429 = vmatprep.subr.mxu0 0.0
        %1430 = vmatpush1.msra.mxu0 %v1263
        %1431 = vmatprep.subr.mxu0 0.0
        %1432 = vmatpush1.msra.mxu0 %v1264
        %1433 = vmatprep.subr.mxu0 0.0
        %1434 = vmatpush1.msra.mxu0 %v1265
        %1435 = vmatprep.subr.mxu0 0.0
        %1436 = vmatpush1.msra.mxu0 %v1266
        %1437 = vmatprep.subr.mxu0 0.0
        %1438 = vmatpush1.msra.mxu0 %v1267
        %1439 = vmatprep.subr.mxu0 0.0
        %1440 = vmatpush1.msra.mxu0 %v1268
        %1441 = vmatprep.subr.mxu0 0.0
        %1442 = vmatpush1.msra.mxu0 %v1269
        %1443 = vmatprep.subr.mxu0 0.0
        %1444 = vmatpush1.msra.mxu0 %v1270
        %1445 = vmatprep.subr.mxu0 0.0
        %1446 = vmatpush1.msra.mxu0 %v1271
        %1447 = vmatprep.subr.mxu0 0.0
        %1448 = vmatpush1.msra.mxu0 %v1272
        %1449 = vmatprep.subr.mxu0 0.0
        %1450 = vmatpush1.msra.mxu0 %v1273
        %1451 = vmatprep.subr.mxu0 0.0
        %1452 = vmatpush1.msra.mxu0 %v1274
        %1453 = vmatprep.subr.mxu0 0.0
        %1454 = vmatpush1.msra.mxu0 %v1275
        %1455 = vmatprep.subr.mxu0 0.0
        %1456 = vmatpush1.msra.mxu0 %v1276
        %1457 = vmatprep.mubr.f32.mxu0 %v1208
        %1458 = vmatmul.mubr.f32.gmra.mrb[0].mxu0 %v1197
        %v1459 = vpop.f32.mrb[0].mxu0
        %v1460 = vadd.f32 %v1370, %v1459
        %v1461 = vpop.f32.mrb[0].mxu0
        %1462 = vmatprep.mubr.f32.mxu0 %v1209
        %1463 = vmatmul.mubr.f32.gmra.mrb[0].mxu0 %v1198
        %v1464 = vpop.f32.mrb[0].mxu0
        %v1465 = vadd.f32 %v1375, %v1464
        %v1466 = vpop.f32.mrb[0].mxu0
        %1467 = vmatprep.mubr.f32.mxu0 %v1210
        %1468 = vmatmul.mubr.f32.gmra.mrb[0].mxu0 %v1199
        %v1469 = vpop.f32.mrb[0].mxu0
        %v1470 = vadd.f32 %v1380, %v1469
        %v1471 = vpop.f32.mrb[0].mxu0
        %1472 = vmatprep.mubr.f32.mxu0 %v1211
        %1473 = vmatmul.mubr.f32.gmra.mrb[0].mxu0 %v1206
        %v1474 = vpop.f32.mrb[0].mxu0
        %v1475 = vadd.f32 %v1385, %v1474
        %v1476 = vpop.f32.mrb[0].mxu0
        %1477 = vmatprep.mubr.f32.mxu0 %v1212
        %1478 = vmatmul.mubr.f32.gmra.mrb[0].mxu0 %v1207
        %v1479 = vpop.f32.mrb[0].mxu0
        %v1480 = vadd.f32 %v1390, %v1479
        %v1481 = vpop.f32.mrb[0].mxu0
        %1482 = vdwg.mxu0
        %1483 = vmatprep.subr.mxu0 0.0
        %1484 = vmatpush1.msra.mxu0 %v1277
        %1485 = vmatprep.subr.mxu0 0.0
        %1486 = vmatpush1.msra.mxu0 %v1278
        %1487 = vmatprep.subr.mxu0 0.0
        %1488 = vmatpush1.msra.mxu0 %v1279
        %1489 = vmatprep.subr.mxu0 0.0
        %1490 = vmatpush1.msra.mxu0 %v1280
        %1491 = vmatprep.subr.mxu0 0.0
        %1492 = vmatpush1.msra.mxu0 %v1281
        %1493 = vmatprep.subr.mxu0 0.0
        %1494 = vmatpush1.msra.mxu0 %v1282
        %1495 = vmatprep.subr.mxu0 0.0
        %1496 = vmatpush1.msra.mxu0 %v1283
        %1497 = vmatprep.subr.mxu0 0.0
        %1498 = vmatpush1.msra.mxu0 %v1284
        %1499 = vmatprep.subr.mxu0 0.0
        %1500 = vmatpush1.msra.mxu0 0.0
        %1501 = vmatprep.subr.mxu0 0.0
        %1502 = vmatpush1.msra.mxu0 0.0
        %1503 = vmatprep.subr.mxu0 0.0
        %1504 = vmatpush1.msra.mxu0 0.0
        %1505 = vmatprep.subr.mxu0 0.0
        %1506 = vmatpush1.msra.mxu0 0.0
        %1507 = vmatprep.subr.mxu0 0.0
        %1508 = vmatpush1.msra.mxu0 0.0
        %1509 = vmatprep.subr.mxu0 0.0
        %1510 = vmatpush1.msra.mxu0 0.0
        %1511 = vmatprep.subr.mxu0 0.0
        %1512 = vmatpush1.msra.mxu0 0.0
        %1513 = vmatprep.subr.mxu0 0.0
        %1514 = vmatpush1.msra.mxu0 0.0
        %1515 = vmatprep.subr.mxu0 0.0
        %1516 = vmatpush1.msra.mxu0 0.0
        %1517 = vmatprep.subr.mxu0 0.0
        %1518 = vmatpush1.msra.mxu0 0.0
        %1519 = vmatprep.subr.mxu0 0.0
        %1520 = vmatpush1.msra.mxu0 0.0
        %1521 = vmatprep.subr.mxu0 0.0
        %1522 = vmatpush1.msra.mxu0 0.0
        %1523 = vmatprep.subr.mxu0 0.0
        %1524 = vmatpush1.msra.mxu0 0.0
        %1525 = vmatprep.subr.mxu0 0.0
        %1526 = vmatpush1.msra.mxu0 0.0
        %1527 = vmatprep.subr.mxu0 0.0
        %1528 = vmatpush1.msra.mxu0 0.0
        %1529 = vmatprep.subr.mxu0 0.0
        %1530 = vmatpush1.msra.mxu0 0.0
        %1531 = vmatprep.subr.mxu0 0.0
        %1532 = vmatpush1.msra.mxu0 0.0
        %1533 = vmatprep.subr.mxu0 0.0
        %1534 = vmatpush1.msra.mxu0 0.0
        %1535 = vmatprep.subr.mxu0 0.0
        %1536 = vmatpush1.msra.mxu0 0.0
        %1537 = vmatprep.subr.mxu0 0.0
        %1538 = vmatpush1.msra.mxu0 0.0
        %1539 = vmatprep.subr.mxu0 0.0
        %1540 = vmatpush1.msra.mxu0 0.0
        %1541 = vmatprep.subr.mxu0 0.0
        %1542 = vmatpush1.msra.mxu0 0.0
        %1543 = vmatprep.subr.mxu0 0.0
        %1544 = vmatpush1.msra.mxu0 0.0
        %1545 = vmatprep.subr.mxu0 0.0
        %1546 = vmatpush1.msra.mxu0 0.0
        %1547 = vmatprep.mubr.f32.mxu0 0.0
        %1548 = vmatmul.mubr.f32.gmra.mrb[0].mxu0 %v1292
        %v1549 = vpop.f32.mrb[0].mxu0
        %v1550 = vadd.f32 %v1460, %v1549
        %v1551 = vpop.f32.mrb[0].mxu0
        %1552 = vmatprep.mubr.f32.mxu0 0.0
        %1553 = vmatmul.mubr.f32.gmra.mrb[0].mxu0 %v1294
        %v1554 = vpop.f32.mrb[0].mxu0
        %v1555 = vadd.f32 %v1465, %v1554
        %v1556 = vpop.f32.mrb[0].mxu0
        %1557 = vmatprep.mubr.f32.mxu0 0.0
        %1558 = vmatmul.mubr.f32.gmra.mrb[0].mxu0 %v1296
        %v1559 = vpop.f32.mrb[0].mxu0
        %v1560 = vadd.f32 %v1470, %v1559
        %v1561 = vpop.f32.mrb[0].mxu0
        %1562 = vmatprep.mubr.f32.mxu0 0.0
        %1563 = vmatmul.mubr.f32.gmra.mrb[0].mxu0 %v1298
        %v1564 = vpop.f32.mrb[0].mxu0
        %v1565 = vadd.f32 %v1475, %v1564
        %v1566 = vpop.f32.mrb[0].mxu0
        %1567 = vmatprep.mubr.f32.mxu0 0.0
        %1568 = vmatmul.mubr.f32.gmra.mrb[0].mxu0 %v1301
        %v1569 = vpop.f32.mrb[0].mxu0
        %v1570 = vadd.f32 %v1480, %v1569
        %v1571 = vpop.f32.mrb[0].mxu0
        %1572 = vdwg.mxu0
        %v1573 = vmax.f32 %v1550, 0.0
        %v1574 = vmax.f32 %v1555, 0.0
        %v1575 = vmax.f32 %v1560, 0.0
        %v1576 = vmax.f32 %v1565, 0.0
        %v1577 = vmax.f32 %v1570, 0.0
        %v1583 = vrot.slane %v1573, 1
        %v1584 = vrot.slane %v1574, 1
        %v1585 = vsel %vm737, %v1583, %v1584
        %v1586 = vrot.slane %v1575, 1
        %v1587 = vsel %vm737, %v1584, %v1586
        %v1588 = vrot.slane %v1576, 1
        %v1589 = vsel %vm737, %v1586, %v1588
        %v1590 = vrot.slane %v1577, 1
        %v1591 = vsel %vm737, %v1588, %v1590
        %v1596 = vmax.f32 %v1573, %v1585
        %v1597 = vmax.f32 %v1574, %v1587
        %v1598 = vmax.f32 %v1575, %v1589
        %v1599 = vmax.f32 %v1576, %v1591
        %v1604 = vrot.slane %v1596, 7
        %v1605 = vrot.slane %v1597, 7
        %v1606 = vsel %vm1139, %v1604, %v1605
        %v1607 = vrot.slane %v1598, 7
        %v1608 = vsel %vm1139, %v1605, %v1607
        %v1609 = vrot.slane %v1599, 7
        %v1610 = vsel %vm1139, %v1607, %v1609
        %v1615 = vmax.f32 %v1596, %v1606
        %v1616 = vmax.f32 %v1597, %v1608
        %v1617 = vmax.f32 %v1598, %v1610
        %v1618 = vmax.f32 %v1599, %v1609
        %v1619 = vld [vmem:[%s10] sm:$0xf]
        %vm1620 = vcmask 203776
        %v1622 = vsel %vm1620, %v1619, 0
        %v1625 = vsel %vm1139, %v1618, 0
        %1627 = vmatprep.subr.mxu0 0.0
        %1628 = vmatpush1.msra.mxu0 %v1615
        %1629 = vmatprep.subr.mxu0 0.0
        %1630 = vmatpush1.msra.mxu0 %v1616
        %1631 = vmatprep.subr.mxu0 0.0
        %1632 = vmatpush1.msra.mxu0 %v1617
        %1633 = vmatprep.subr.mxu0 0.0
        %1634 = vmatpush1.msra.mxu0 %v1625
        %1635 = vmatprep.subr.mxu0 0.0
        %1636 = vmatpush1.msra.mxu0 0.0
        %1637 = vmatprep.subr.mxu0 0.0
        %1638 = vmatpush1.msra.mxu0 0.0
        %1639 = vmatprep.subr.mxu0 0.0
        %1640 = vmatpush1.msra.mxu0 0.0
        %1641 = vmatprep.subr.mxu0 0.0
        %1642 = vmatpush1.msra.mxu0 0.0
        %1643 = vmatprep.subr.mxu0 0.0
        %1644 = vmatpush1.msra.mxu0 0.0
        %1645 = vmatprep.subr.mxu0 0.0
        %1646 = vmatpush1.msra.mxu0 0.0
        %1647 = vmatprep.subr.mxu0 0.0
        %1648 = vmatpush1.msra.mxu0 0.0
        %1649 = vmatprep.subr.mxu0 0.0
        %1650 = vmatpush1.msra.mxu0 0.0
        %1651 = vmatprep.subr.mxu0 0.0
        %1652 = vmatpush1.msra.mxu0 0.0
        %1653 = vmatprep.subr.mxu0 0.0
        %1654 = vmatpush1.msra.mxu0 0.0
        %1655 = vmatprep.subr.mxu0 0.0
        %1656 = vmatpush1.msra.mxu0 0.0
        %1657 = vmatprep.subr.mxu0 0.0
        %1658 = vmatpush1.msra.mxu0 0.0
        %1659 = vmatprep.subr.mxu0 0.0
        %1660 = vmatpush1.msra.mxu0 0.0
        %1661 = vmatprep.subr.mxu0 0.0
        %1662 = vmatpush1.msra.mxu0 0.0
        %1663 = vmatprep.subr.mxu0 0.0
        %1664 = vmatpush1.msra.mxu0 0.0
        %1665 = vmatprep.subr.mxu0 0.0
        %1666 = vmatpush1.msra.mxu0 0.0
        %1667 = vmatprep.subr.mxu0 0.0
        %1668 = vmatpush1.msra.mxu0 0.0
        %1669 = vmatprep.subr.mxu0 0.0
        %1670 = vmatpush1.msra.mxu0 0.0
        %1671 = vmatprep.subr.mxu0 0.0
        %1672 = vmatpush1.msra.mxu0 0.0
        %1673 = vmatprep.subr.mxu0 0.0
        %1674 = vmatpush1.msra.mxu0 0.0
        %1675 = vmatprep.subr.mxu0 0.0
        %1676 = vmatpush1.msra.mxu0 0.0
        %1677 = vmatprep.subr.mxu0 0.0
        %1678 = vmatpush1.msra.mxu0 0.0
        %1679 = vmatprep.subr.mxu0 0.0
        %1680 = vmatpush1.msra.mxu0 0.0
        %1681 = vmatprep.subr.mxu0 0.0
        %1682 = vmatpush1.msra.mxu0 0.0
        %1683 = vmatprep.subr.mxu0 0.0
        %1684 = vmatpush1.msra.mxu0 0.0
        %1685 = vmatprep.subr.mxu0 0.0
        %1686 = vmatpush1.msra.mxu0 0.0
        %1687 = vmatprep.subr.mxu0 0.0
        %1688 = vmatpush1.msra.mxu0 0.0
        %1689 = vmatprep.subr.mxu0 0.0
        %1690 = vmatpush1.msra.mxu0 0.0
        %1691 = vmatprep.mubr.f32.mxu0 0.0
        %1692 = vmatmul.mubr.f32.gmra.mrb[0].mxu0 %v1622
        %v1693 = vpop.f32.mrb[0].mxu0
        %v1694 = vadd.f32 0.0, %v1693
        %v1695 = vpop.f32.mrb[0].mxu0
        %1696 = vdwg.mxu0
        %v1698 = vrot.slane %v1694, 7
        %v1700 = vsel %vm1139, 0.0, %v1698
        %vm1701 = vcmask 1042432
        %v1702 = vsel %vm1701, %v1700, 0.0
        %v1703 = vrot.slane %v1694, 1
        %v1705 = vsel %vm1139, 0.0, %v1703
        %v1706 = vsel %vm1701, %v1705, 0.0
        %v1708 = vrot.slane %v1702, 4
        %vm1710 = vcmask 1043456
        %v1711 = vsel %vm1710, 0.0, %v1708
        %v1712 = vsel %vm1710, %v1706, 0.0
        %v1714 = vrot.slane %v1711, 1
        %1715 = vrot.lane.b32.xlu0 %v1714, 64
        %v1716 = vpop.permute.xlu0 %1715
        %v1718 = vrot.slane %v1711, 2
        %v1721 = vrot.slane %v1711, 4
        %v1722 = vrot.slane %v1712, 4
        %v1723 = vsel %vm1710, %v1721, %v1722
        %1724 = vrot.lane.b32.xlu0 %v1723, 64
        %v1725 = vpop.permute.xlu0 %1724
        %v1727 = vrot.slane %v1711, 5
        %v1728 = vrot.slane %v1712, 5
        %v1729 = vsel %vm1701, %v1727, %v1728
        %v1731 = vrot.slane %v1711, 6
        %v1732 = vrot.slane %v1712, 6
        %v1733 = vsel %vm861, %v1731, %v1732
        %1734 = vrot.lane.b32.xlu0 %v1733, 64
        %v1735 = vpop.permute.xlu0 %1734
        %v1737 = vrot.slane %v1712, 1
        %1738 = vrot.lane.b32.xlu0 %v1737, 64
        %v1739 = vpop.permute.xlu0 %1738
        %v1741 = vrot.slane %v1712, 2
        %v1742 = vsel %vm1195, %v1711, %v1716
        %v1743 = vsel %vm1195, %v1718, %v1725
        %v1744 = vsel %vm1195, %v1729, %v1735
        %v1745 = vsel %vm1195, %v1712, %v1739
        %v1746 = vld [vmem:[%s5] sm:$0xff]
        %v1747 = vld [vmem:[%s5 + $0x8] sm:$0xff]
        %v1748 = vld [vmem:[%s5 + $0x10] sm:$0xff]
        %v1749 = vld [vmem:[%s5 + $0x18] sm:$0xff]
        %v1750 = vld [vmem:[%s5 + $0x20] sm:$0xff]
        %v1751 = vld [vmem:[%s5 + $0x28] sm:$0xff]
        %v1752 = vld [vmem:[%s5 + $0x30] sm:$0xff]
        %v1753 = vld [vmem:[%s5 + $0x38] sm:$0xff]
        %v1754 = vld [vmem:[%s5 + $0x40] sm:$0xff]
        %v1755 = vld [vmem:[%s5 + $0x48] sm:$0xff]
        %v1756 = vld [vmem:[%s5 + $0x50] sm:$0xff]
        %v1757 = vld [vmem:[%s5 + $0x58] sm:$0xff]
        %v1758 = vld [vmem:[%s5 + $0x60] sm:$0xff]
        %v1759 = vld [vmem:[%s5 + $0x68] sm:$0xff]
        %v1760 = vld [vmem:[%s5 + $0x70] sm:$0xff]
        %v1761 = vld [vmem:[%s5 + $0x78] sm:$0xff]
        %v1762 = vld [vmem:[%s5 + $0x80] sm:$0xff]
        %v1763 = vld [vmem:[%s5 + $0x88] sm:$0xff]
        %v1764 = vld [vmem:[%s5 + $0x90] sm:$0xff]
        %v1765 = vld [vmem:[%s5 + $0x98] sm:$0xff]
        %v1766 = vld [vmem:[%s5 + $0xa0] sm:$0xff]
        %v1767 = vld [vmem:[%s5 + $0xa8] sm:$0xff]
        %v1768 = vld [vmem:[%s5 + $0xb0] sm:$0xff]
        %v1769 = vld [vmem:[%s5 + $0xb8] sm:$0xff]
        %v1770 = vld [vmem:[%s5 + $0xc0] sm:$0xff]
        %v1771 = vld [vmem:[%s5 + $0xc8] sm:$0xff]
        %v1772 = vld [vmem:[%s5 + $0xd0] sm:$0xff]
        %v1773 = vld [vmem:[%s5 + $0xd8] sm:$0xff]
        %v1774 = vld [vmem:[%s5 + $0xe0] sm:$0xff]
        %v1775 = vld [vmem:[%s5 + $0xe8] sm:$0xff]
        %v1776 = vld [vmem:[%s5 + $0xf0] sm:$0xff]
        %v1777 = vld [vmem:[%s5 + $0xf8] sm:$0xff]
        %v1778 = vld [vmem:[%s5 + $0x100] sm:$0xff]
        %v1779 = vld [vmem:[%s5 + $0x108] sm:$0xff]
        %v1780 = vld [vmem:[%s5 + $0x110] sm:$0xff]
        %v1781 = vld [vmem:[%s5 + $0x118] sm:$0xff]
        %v1782 = vld [vmem:[%s5 + $0x120] sm:$0xff]
        %v1783 = vld [vmem:[%s5 + $0x128] sm:$0xff]
        %v1784 = vld [vmem:[%s5 + $0x130] sm:$0xff]
        %v1785 = vld [vmem:[%s5 + $0x138] sm:$0xff]
        %v1786 = vld [vmem:[%s5 + $0x140] sm:$0xff]
        %v1787 = vld [vmem:[%s5 + $0x148] sm:$0xff]
        %v1788 = vld [vmem:[%s5 + $0x150] sm:$0xff]
        %v1789 = vld [vmem:[%s5 + $0x158] sm:$0xff]
        %v1790 = vld [vmem:[%s5 + $0x160] sm:$0xff]
        %v1791 = vld [vmem:[%s5 + $0x168] sm:$0xff]
        %v1792 = vld [vmem:[%s5 + $0x170] sm:$0xff]
        %v1793 = vld [vmem:[%s5 + $0x178] sm:$0xff]
        %v1794 = vld [vmem:[%s5 + $0x180] sm:$0xff]
        %v1795 = vld [vmem:[%s5 + $0x188] sm:$0xff]
        %v1796 = vld [vmem:[%s5 + $0x190] sm:$0xff]
        %v1797 = vld [vmem:[%s5 + $0x198] sm:$0xff]
        %v1798 = vld [vmem:[%s5 + $0x1a0] sm:$0xff]
        %v1799 = vld [vmem:[%s5 + $0x1a8] sm:$0xff]
        %v1800 = vld [vmem:[%s5 + $0x1b0] sm:$0xff]
        %v1801 = vld [vmem:[%s5 + $0x1b8] sm:$0xff]
        %v1802 = vld [vmem:[%s5 + $0x1c0] sm:$0xff]
        %v1803 = vld [vmem:[%s5 + $0x1c8] sm:$0xff]
        %v1804 = vld [vmem:[%s5 + $0x1d0] sm:$0xff]
        %v1805 = vld [vmem:[%s5 + $0x1d8] sm:$0xff]
        %v1806 = vld [vmem:[%s5 + $0x1e0] sm:$0xff]
        %v1807 = vld [vmem:[%s5 + $0x1e8] sm:$0xff]
        %v1808 = vld [vmem:[%s5 + $0x1f0] sm:$0xff]
        %v1809 = vld [vmem:[%s5 + $0x1f8] sm:$0xff]
        %v1810 = vld [vmem:[%s5 + $0x200] sm:$0xff]
        %v1811 = vld [vmem:[%s5 + $0x208] sm:$0xff]
        %v1812 = vld [vmem:[%s5 + $0x210] sm:$0xff]
        %v1813 = vld [vmem:[%s5 + $0x218] sm:$0xff]
        %v1814 = vld [vmem:[%s5 + $0x220] sm:$0xff]
        %v1815 = vld [vmem:[%s5 + $0x228] sm:$0xff]
        %v1816 = vld [vmem:[%s5 + $0x230] sm:$0xff]
        %v1817 = vld [vmem:[%s5 + $0x238] sm:$0xff]
        %v1818 = vld [vmem:[%s6] sm:$0x1]
        %v1820 = vlaneseq
        %v1821 = vshrl.u32 %v1820, 7
        %v1822 = vsub.s32 0, %v1821
        %v1823 = vrot.slane %v1818, %v1822
        %v1825 = vsel %vm1195, %v1741, 0
        %1827 = vmatprep.subr.mxu0 0.0
        %1828 = vmatpush1.msra.mxu0 %v1746
        %1829 = vmatprep.subr.mxu0 0.0
        %1830 = vmatpush1.msra.mxu0 %v1747
        %1831 = vmatprep.subr.mxu0 0.0
        %1832 = vmatpush1.msra.mxu0 %v1748
        %1833 = vmatprep.subr.mxu0 0.0
        %1834 = vmatpush1.msra.mxu0 %v1749
        %1835 = vmatprep.subr.mxu0 0.0
        %1836 = vmatpush1.msra.mxu0 %v1750
        %1837 = vmatprep.subr.mxu0 0.0
        %1838 = vmatpush1.msra.mxu0 %v1751
        %1839 = vmatprep.subr.mxu0 0.0
        %1840 = vmatpush1.msra.mxu0 %v1752
        %1841 = vmatprep.subr.mxu0 0.0
        %1842 = vmatpush1.msra.mxu0 %v1753
        %1843 = vmatprep.subr.mxu0 0.0
        %1844 = vmatpush1.msra.mxu0 %v1754
        %1845 = vmatprep.subr.mxu0 0.0
        %1846 = vmatpush1.msra.mxu0 %v1755
        %1847 = vmatprep.subr.mxu0 0.0
        %1848 = vmatpush1.msra.mxu0 %v1756
        %1849 = vmatprep.subr.mxu0 0.0
        %1850 = vmatpush1.msra.mxu0 %v1757
        %1851 = vmatprep.subr.mxu0 0.0
        %1852 = vmatpush1.msra.mxu0 %v1758
        %1853 = vmatprep.subr.mxu0 0.0
        %1854 = vmatpush1.msra.mxu0 %v1759
        %1855 = vmatprep.subr.mxu0 0.0
        %1856 = vmatpush1.msra.mxu0 %v1760
        %1857 = vmatprep.subr.mxu0 0.0
        %1858 = vmatpush1.msra.mxu0 %v1761
        %1859 = vmatprep.subr.mxu0 0.0
        %1860 = vmatpush1.msra.mxu0 %v1762
        %1861 = vmatprep.subr.mxu0 0.0
        %1862 = vmatpush1.msra.mxu0 %v1763
        %1863 = vmatprep.subr.mxu0 0.0
        %1864 = vmatpush1.msra.mxu0 %v1764
        %1865 = vmatprep.subr.mxu0 0.0
        %1866 = vmatpush1.msra.mxu0 %v1765
        %1867 = vmatprep.subr.mxu0 0.0
        %1868 = vmatpush1.msra.mxu0 %v1766
        %1869 = vmatprep.subr.mxu0 0.0
        %1870 = vmatpush1.msra.mxu0 %v1767
        %1871 = vmatprep.subr.mxu0 0.0
        %1872 = vmatpush1.msra.mxu0 %v1768
        %1873 = vmatprep.subr.mxu0 0.0
        %1874 = vmatpush1.msra.mxu0 %v1769
        %1875 = vmatprep.subr.mxu0 0.0
        %1876 = vmatpush1.msra.mxu0 %v1770
        %1877 = vmatprep.subr.mxu0 0.0
        %1878 = vmatpush1.msra.mxu0 %v1771
        %1879 = vmatprep.subr.mxu0 0.0
        %1880 = vmatpush1.msra.mxu0 %v1772
        %1881 = vmatprep.subr.mxu0 0.0
        %1882 = vmatpush1.msra.mxu0 %v1773
        %1883 = vmatprep.subr.mxu0 0.0
        %1884 = vmatpush1.msra.mxu0 %v1774
        %1885 = vmatprep.subr.mxu0 0.0
        %1886 = vmatpush1.msra.mxu0 %v1775
        %1887 = vmatprep.subr.mxu0 0.0
        %1888 = vmatpush1.msra.mxu0 %v1776
        %1889 = vmatprep.subr.mxu0 0.0
        %1890 = vmatpush1.msra.mxu0 %v1777
        %1891 = vmatprep.mubr.f32.mxu0 %v1743
        %1892 = vmatmul.mubr.f32.gmra.mrb[0].mxu0 %v1742
        %v1893 = vpop.f32.mrb[0].mxu0
        %v1894 = vadd.f32 %v1823, %v1893
        %v1895 = vpop.f32.mrb[0].mxu0
        %1896 = vdwg.mxu0
        %1897 = vmatprep.subr.mxu0 0.0
        %1898 = vmatpush1.msra.mxu0 %v1778
        %1899 = vmatprep.subr.mxu0 0.0
        %1900 = vmatpush1.msra.mxu0 %v1779
        %1901 = vmatprep.subr.mxu0 0.0
        %1902 = vmatpush1.msra.mxu0 %v1780
        %1903 = vmatprep.subr.mxu0 0.0
        %1904 = vmatpush1.msra.mxu0 %v1781
        %1905 = vmatprep.subr.mxu0 0.0
        %1906 = vmatpush1.msra.mxu0 %v1782
        %1907 = vmatprep.subr.mxu0 0.0
        %1908 = vmatpush1.msra.mxu0 %v1783
        %1909 = vmatprep.subr.mxu0 0.0
        %1910 = vmatpush1.msra.mxu0 %v1784
        %1911 = vmatprep.subr.mxu0 0.0
        %1912 = vmatpush1.msra.mxu0 %v1785
        %1913 = vmatprep.subr.mxu0 0.0
        %1914 = vmatpush1.msra.mxu0 %v1786
        %1915 = vmatprep.subr.mxu0 0.0
        %1916 = vmatpush1.msra.mxu0 %v1787
        %1917 = vmatprep.subr.mxu0 0.0
        %1918 = vmatpush1.msra.mxu0 %v1788
        %1919 = vmatprep.subr.mxu0 0.0
        %1920 = vmatpush1.msra.mxu0 %v1789
        %1921 = vmatprep.subr.mxu0 0.0
        %1922 = vmatpush1.msra.mxu0 %v1790
        %1923 = vmatprep.subr.mxu0 0.0
        %1924 = vmatpush1.msra.mxu0 %v1791
        %1925 = vmatprep.subr.mxu0 0.0
        %1926 = vmatpush1.msra.mxu0 %v1792
        %1927 = vmatprep.subr.mxu0 0.0
        %1928 = vmatpush1.msra.mxu0 %v1793
        %1929 = vmatprep.subr.mxu0 0.0
        %1930 = vmatpush1.msra.mxu0 %v1794
        %1931 = vmatprep.subr.mxu0 0.0
        %1932 = vmatpush1.msra.mxu0 %v1795
        %1933 = vmatprep.subr.mxu0 0.0
        %1934 = vmatpush1.msra.mxu0 %v1796
        %1935 = vmatprep.subr.mxu0 0.0
        %1936 = vmatpush1.msra.mxu0 %v1797
        %1937 = vmatprep.subr.mxu0 0.0
        %1938 = vmatpush1.msra.mxu0 %v1798
        %1939 = vmatprep.subr.mxu0 0.0
        %1940 = vmatpush1.msra.mxu0 %v1799
        %1941 = vmatprep.subr.mxu0 0.0
        %1942 = vmatpush1.msra.mxu0 %v1800
        %1943 = vmatprep.subr.mxu0 0.0
        %1944 = vmatpush1.msra.mxu0 %v1801
        %1945 = vmatprep.subr.mxu0 0.0
        %1946 = vmatpush1.msra.mxu0 %v1802
        %1947 = vmatprep.subr.mxu0 0.0
        %1948 = vmatpush1.msra.mxu0 %v1803
        %1949 = vmatprep.subr.mxu0 0.0
        %1950 = vmatpush1.msra.mxu0 %v1804
        %1951 = vmatprep.subr.mxu0 0.0
        %1952 = vmatpush1.msra.mxu0 %v1805
        %1953 = vmatprep.subr.mxu0 0.0
        %1954 = vmatpush1.msra.mxu0 %v1806
        %1955 = vmatprep.subr.mxu0 0.0
        %1956 = vmatpush1.msra.mxu0 %v1807
        %1957 = vmatprep.subr.mxu0 0.0
        %1958 = vmatpush1.msra.mxu0 %v1808
        %1959 = vmatprep.subr.mxu0 0.0
        %1960 = vmatpush1.msra.mxu0 %v1809
        %1961 = vmatprep.mubr.f32.mxu0 %v1745
        %1962 = vmatmul.mubr.f32.gmra.mrb[0].mxu0 %v1744
        %v1963 = vpop.f32.mrb[0].mxu0
        %v1964 = vadd.f32 %v1894, %v1963
        %v1965 = vpop.f32.mrb[0].mxu0
        %1966 = vdwg.mxu0
        %1967 = vmatprep.subr.mxu0 0.0
        %1968 = vmatpush1.msra.mxu0 %v1810
        %1969 = vmatprep.subr.mxu0 0.0
        %1970 = vmatpush1.msra.mxu0 %v1811
        %1971 = vmatprep.subr.mxu0 0.0
        %1972 = vmatpush1.msra.mxu0 %v1812
        %1973 = vmatprep.subr.mxu0 0.0
        %1974 = vmatpush1.msra.mxu0 %v1813
        %1975 = vmatprep.subr.mxu0 0.0
        %1976 = vmatpush1.msra.mxu0 %v1814
        %1977 = vmatprep.subr.mxu0 0.0
        %1978 = vmatpush1.msra.mxu0 %v1815
        %1979 = vmatprep.subr.mxu0 0.0
        %1980 = vmatpush1.msra.mxu0 %v1816
        %1981 = vmatprep.subr.mxu0 0.0
        %1982 = vmatpush1.msra.mxu0 %v1817
        %1983 = vmatprep.subr.mxu0 0.0
        %1984 = vmatpush1.msra.mxu0 0.0
        %1985 = vmatprep.subr.mxu0 0.0
        %1986 = vmatpush1.msra.mxu0 0.0
        %1987 = vmatprep.subr.mxu0 0.0
        %1988 = vmatpush1.msra.mxu0 0.0
        %1989 = vmatprep.subr.mxu0 0.0
        %1990 = vmatpush1.msra.mxu0 0.0
        %1991 = vmatprep.subr.mxu0 0.0
        %1992 = vmatpush1.msra.mxu0 0.0
        %1993 = vmatprep.subr.mxu0 0.0
        %1994 = vmatpush1.msra.mxu0 0.0
        %1995 = vmatprep.subr.mxu0 0.0
        %1996 = vmatpush1.msra.mxu0 0.0
        %1997 = vmatprep.subr.mxu0 0.0
        %1998 = vmatpush1.msra.mxu0 0.0
        %1999 = vmatprep.subr.mxu0 0.0
        %2000 = vmatpush1.msra.mxu0 0.0
        %2001 = vmatprep.subr.mxu0 0.0
        %2002 = vmatpush1.msra.mxu0 0.0
        %2003 = vmatprep.subr.mxu0 0.0
        %2004 = vmatpush1.msra.mxu0 0.0
        %2005 = vmatprep.subr.mxu0 0.0
        %2006 = vmatpush1.msra.mxu0 0.0
        %2007 = vmatprep.subr.mxu0 0.0
        %2008 = vmatpush1.msra.mxu0 0.0
        %2009 = vmatprep.subr.mxu0 0.0
        %2010 = vmatpush1.msra.mxu0 0.0
        %2011 = vmatprep.subr.mxu0 0.0
        %2012 = vmatpush1.msra.mxu0 0.0
        %2013 = vmatprep.subr.mxu0 0.0
        %2014 = vmatpush1.msra.mxu0 0.0
        %2015 = vmatprep.subr.mxu0 0.0
        %2016 = vmatpush1.msra.mxu0 0.0
        %2017 = vmatprep.subr.mxu0 0.0
        %2018 = vmatpush1.msra.mxu0 0.0
        %2019 = vmatprep.subr.mxu0 0.0
        %2020 = vmatpush1.msra.mxu0 0.0
        %2021 = vmatprep.subr.mxu0 0.0
        %2022 = vmatpush1.msra.mxu0 0.0
        %2023 = vmatprep.subr.mxu0 0.0
        %2024 = vmatpush1.msra.mxu0 0.0
        %2025 = vmatprep.subr.mxu0 0.0
        %2026 = vmatpush1.msra.mxu0 0.0
        %2027 = vmatprep.subr.mxu0 0.0
        %2028 = vmatpush1.msra.mxu0 0.0
        %2029 = vmatprep.subr.mxu0 0.0
        %2030 = vmatpush1.msra.mxu0 0.0
        %2031 = vmatprep.mubr.f32.mxu0 0.0
        %2032 = vmatmul.mubr.f32.gmra.mrb[0].mxu0 %v1825
        %v2033 = vpop.f32.mrb[0].mxu0
        %v2034 = vadd.f32 %v1964, %v2033
        %v2035 = vpop.f32.mrb[0].mxu0
        %2036 = vdwg.mxu0
        %v2037 = vmax.f32 %v2034, 0.0
        %v2039 = vrot.slane %v2037, 2
        %v2041 = vsel %vm861, %v2037, %v2039
        %v2043 = vrot.slane %v2041, 7
        %v2045 = vsel %vm1139, 0.0, %v2043
        %v2046 = vsel %vm1701, %v2045, 0.0
        %v2047 = vrot.slane %v2041, 1
        %v2049 = vsel %vm1139, 0.0, %v2047
        %v2050 = vsel %vm1701, %v2049, 0.0
        %v2052 = vrot.slane %v2046, 4
        %v2054 = vsel %vm1710, 0.0, %v2052
        %v2055 = vsel %vm1710, %v2050, 0.0
        %v2057 = vrot.slane %v2054, 1
        %2058 = vrot.lane.b32.xlu0 %v2057, 64
        %v2059 = vpop.permute.xlu0 %2058
        %v2061 = vrot.slane %v2054, 2
        %v2064 = vrot.slane %v2054, 4
        %v2065 = vrot.slane %v2055, 4
        %v2066 = vsel %vm1710, %v2064, %v2065
        %2067 = vrot.lane.b32.xlu0 %v2066, 64
        %v2068 = vpop.permute.xlu0 %2067
        %v2070 = vrot.slane %v2054, 5
        %v2071 = vrot.slane %v2055, 5
        %v2072 = vsel %vm1701, %v2070, %v2071
        %v2074 = vrot.slane %v2054, 6
        %v2075 = vrot.slane %v2055, 6
        %v2076 = vsel %vm861, %v2074, %v2075
        %2077 = vrot.lane.b32.xlu0 %v2076, 64
        %v2078 = vpop.permute.xlu0 %2077
        %v2080 = vrot.slane %v2055, 1
        %2081 = vrot.lane.b32.xlu0 %v2080, 64
        %v2082 = vpop.permute.xlu0 %2081
        %v2084 = vrot.slane %v2055, 2
        %v2085 = vsel %vm1195, %v2054, %v2059
        %v2086 = vsel %vm1195, %v2061, %v2068
        %v2087 = vsel %vm1195, %v2072, %v2078
        %v2088 = vsel %vm1195, %v2055, %v2082
        %v2089 = vld [vmem:[%s7] sm:$0xff]
        %v2090 = vld [vmem:[%s7 + $0x8] sm:$0xff]
        %v2091 = vld [vmem:[%s7 + $0x10] sm:$0xff]
        %v2092 = vld [vmem:[%s7 + $0x18] sm:$0xff]
        %v2093 = vld [vmem:[%s7 + $0x20] sm:$0xff]
        %v2094 = vld [vmem:[%s7 + $0x28] sm:$0xff]
        %v2095 = vld [vmem:[%s7 + $0x30] sm:$0xff]
        %v2096 = vld [vmem:[%s7 + $0x38] sm:$0xff]
        %v2097 = vld [vmem:[%s7 + $0x40] sm:$0xff]
        %v2098 = vld [vmem:[%s7 + $0x48] sm:$0xff]
        %v2099 = vld [vmem:[%s7 + $0x50] sm:$0xff]
        %v2100 = vld [vmem:[%s7 + $0x58] sm:$0xff]
        %v2101 = vld [vmem:[%s7 + $0x60] sm:$0xff]
        %v2102 = vld [vmem:[%s7 + $0x68] sm:$0xff]
        %v2103 = vld [vmem:[%s7 + $0x70] sm:$0xff]
        %v2104 = vld [vmem:[%s7 + $0x78] sm:$0xff]
        %v2105 = vld [vmem:[%s7 + $0x80] sm:$0xff]
        %v2106 = vld [vmem:[%s7 + $0x88] sm:$0xff]
        %v2107 = vld [vmem:[%s7 + $0x90] sm:$0xff]
        %v2108 = vld [vmem:[%s7 + $0x98] sm:$0xff]
        %v2109 = vld [vmem:[%s7 + $0xa0] sm:$0xff]
        %v2110 = vld [vmem:[%s7 + $0xa8] sm:$0xff]
        %v2111 = vld [vmem:[%s7 + $0xb0] sm:$0xff]
        %v2112 = vld [vmem:[%s7 + $0xb8] sm:$0xff]
        %v2113 = vld [vmem:[%s7 + $0xc0] sm:$0xff]
        %v2114 = vld [vmem:[%s7 + $0xc8] sm:$0xff]
        %v2115 = vld [vmem:[%s7 + $0xd0] sm:$0xff]
        %v2116 = vld [vmem:[%s7 + $0xd8] sm:$0xff]
        %v2117 = vld [vmem:[%s7 + $0xe0] sm:$0xff]
        %v2118 = vld [vmem:[%s7 + $0xe8] sm:$0xff]
        %v2119 = vld [vmem:[%s7 + $0xf0] sm:$0xff]
        %v2120 = vld [vmem:[%s7 + $0xf8] sm:$0xff]
        %v2121 = vld [vmem:[%s7 + $0x100] sm:$0xff]
        %v2122 = vld [vmem:[%s7 + $0x108] sm:$0xff]
        %v2123 = vld [vmem:[%s7 + $0x110] sm:$0xff]
        %v2124 = vld [vmem:[%s7 + $0x118] sm:$0xff]
        %v2125 = vld [vmem:[%s7 + $0x120] sm:$0xff]
        %v2126 = vld [vmem:[%s7 + $0x128] sm:$0xff]
        %v2127 = vld [vmem:[%s7 + $0x130] sm:$0xff]
        %v2128 = vld [vmem:[%s7 + $0x138] sm:$0xff]
        %v2129 = vld [vmem:[%s7 + $0x140] sm:$0xff]
        %v2130 = vld [vmem:[%s7 + $0x148] sm:$0xff]
        %v2131 = vld [vmem:[%s7 + $0x150] sm:$0xff]
        %v2132 = vld [vmem:[%s7 + $0x158] sm:$0xff]
        %v2133 = vld [vmem:[%s7 + $0x160] sm:$0xff]
        %v2134 = vld [vmem:[%s7 + $0x168] sm:$0xff]
        %v2135 = vld [vmem:[%s7 + $0x170] sm:$0xff]
        %v2136 = vld [vmem:[%s7 + $0x178] sm:$0xff]
        %v2137 = vld [vmem:[%s7 + $0x180] sm:$0xff]
        %v2138 = vld [vmem:[%s7 + $0x188] sm:$0xff]
        %v2139 = vld [vmem:[%s7 + $0x190] sm:$0xff]
        %v2140 = vld [vmem:[%s7 + $0x198] sm:$0xff]
        %v2141 = vld [vmem:[%s7 + $0x1a0] sm:$0xff]
        %v2142 = vld [vmem:[%s7 + $0x1a8] sm:$0xff]
        %v2143 = vld [vmem:[%s7 + $0x1b0] sm:$0xff]
        %v2144 = vld [vmem:[%s7 + $0x1b8] sm:$0xff]
        %v2145 = vld [vmem:[%s7 + $0x1c0] sm:$0xff]
        %v2146 = vld [vmem:[%s7 + $0x1c8] sm:$0xff]
        %v2147 = vld [vmem:[%s7 + $0x1d0] sm:$0xff]
        %v2148 = vld [vmem:[%s7 + $0x1d8] sm:$0xff]
        %v2149 = vld [vmem:[%s7 + $0x1e0] sm:$0xff]
        %v2150 = vld [vmem:[%s7 + $0x1e8] sm:$0xff]
        %v2151 = vld [vmem:[%s7 + $0x1f0] sm:$0xff]
        %v2152 = vld [vmem:[%s7 + $0x1f8] sm:$0xff]
        %v2153 = vld [vmem:[%s7 + $0x200] sm:$0xff]
        %v2154 = vld [vmem:[%s7 + $0x208] sm:$0xff]
        %v2155 = vld [vmem:[%s7 + $0x210] sm:$0xff]
        %v2156 = vld [vmem:[%s7 + $0x218] sm:$0xff]
        %v2157 = vld [vmem:[%s7 + $0x220] sm:$0xff]
        %v2158 = vld [vmem:[%s7 + $0x228] sm:$0xff]
        %v2159 = vld [vmem:[%s7 + $0x230] sm:$0xff]
        %v2160 = vld [vmem:[%s7 + $0x238] sm:$0xff]
        %v2161 = vld [vmem:[%s8] sm:$0x1]
        %v2163 = vlaneseq
        %v2164 = vshrl.u32 %v2163, 7
        %v2165 = vsub.s32 0, %v2164
        %v2166 = vrot.slane %v2161, %v2165
        %v2168 = vsel %vm1195, %v2084, 0
        %2170 = vmatprep.subr.mxu0 0.0
        %2171 = vmatpush1.msra.mxu0 %v2089
        %2172 = vmatprep.subr.mxu0 0.0
        %2173 = vmatpush1.msra.mxu0 %v2090
        %2174 = vmatprep.subr.mxu0 0.0
        %2175 = vmatpush1.msra.mxu0 %v2091
        %2176 = vmatprep.subr.mxu0 0.0
        %2177 = vmatpush1.msra.mxu0 %v2092
        %2178 = vmatprep.subr.mxu0 0.0
        %2179 = vmatpush1.msra.mxu0 %v2093
        %2180 = vmatprep.subr.mxu0 0.0
        %2181 = vmatpush1.msra.mxu0 %v2094
        %2182 = vmatprep.subr.mxu0 0.0
        %2183 = vmatpush1.msra.mxu0 %v2095
        %2184 = vmatprep.subr.mxu0 0.0
        %2185 = vmatpush1.msra.mxu0 %v2096
        %2186 = vmatprep.subr.mxu0 0.0
        %2187 = vmatpush1.msra.mxu0 %v2097
        %2188 = vmatprep.subr.mxu0 0.0
        %2189 = vmatpush1.msra.mxu0 %v2098
        %2190 = vmatprep.subr.mxu0 0.0
        %2191 = vmatpush1.msra.mxu0 %v2099
        %2192 = vmatprep.subr.mxu0 0.0
        %2193 = vmatpush1.msra.mxu0 %v2100
        %2194 = vmatprep.subr.mxu0 0.0
        %2195 = vmatpush1.msra.mxu0 %v2101
        %2196 = vmatprep.subr.mxu0 0.0
        %2197 = vmatpush1.msra.mxu0 %v2102
        %2198 = vmatprep.subr.mxu0 0.0
        %2199 = vmatpush1.msra.mxu0 %v2103
        %2200 = vmatprep.subr.mxu0 0.0
        %2201 = vmatpush1.msra.mxu0 %v2104
        %2202 = vmatprep.subr.mxu0 0.0
        %2203 = vmatpush1.msra.mxu0 %v2105
        %2204 = vmatprep.subr.mxu0 0.0
        %2205 = vmatpush1.msra.mxu0 %v2106
        %2206 = vmatprep.subr.mxu0 0.0
        %2207 = vmatpush1.msra.mxu0 %v2107
        %2208 = vmatprep.subr.mxu0 0.0
        %2209 = vmatpush1.msra.mxu0 %v2108
        %2210 = vmatprep.subr.mxu0 0.0
        %2211 = vmatpush1.msra.mxu0 %v2109
        %2212 = vmatprep.subr.mxu0 0.0
        %2213 = vmatpush1.msra.mxu0 %v2110
        %2214 = vmatprep.subr.mxu0 0.0
        %2215 = vmatpush1.msra.mxu0 %v2111
        %2216 = vmatprep.subr.mxu0 0.0
        %2217 = vmatpush1.msra.mxu0 %v2112
        %2218 = vmatprep.subr.mxu0 0.0
        %2219 = vmatpush1.msra.mxu0 %v2113
        %2220 = vmatprep.subr.mxu0 0.0
        %2221 = vmatpush1.msra.mxu0 %v2114
        %2222 = vmatprep.subr.mxu0 0.0
        %2223 = vmatpush1.msra.mxu0 %v2115
        %2224 = vmatprep.subr.mxu0 0.0
        %2225 = vmatpush1.msra.mxu0 %v2116
        %2226 = vmatprep.subr.mxu0 0.0
        %2227 = vmatpush1.msra.mxu0 %v2117
        %2228 = vmatprep.subr.mxu0 0.0
        %2229 = vmatpush1.msra.mxu0 %v2118
        %2230 = vmatprep.subr.mxu0 0.0
        %2231 = vmatpush1.msra.mxu0 %v2119
        %2232 = vmatprep.subr.mxu0 0.0
        %2233 = vmatpush1.msra.mxu0 %v2120
        %2234 = vmatprep.mubr.f32.mxu0 %v2086
        %2235 = vmatmul.mubr.f32.gmra.mrb[0].mxu0 %v2085
        %v2236 = vpop.f32.mrb[0].mxu0
        %v2237 = vadd.f32 %v2166, %v2236
        %v2238 = vpop.f32.mrb[0].mxu0
        %2239 = vdwg.mxu0
        %2240 = vmatprep.subr.mxu0 0.0
        %2241 = vmatpush1.msra.mxu0 %v2121
        %2242 = vmatprep.subr.mxu0 0.0
        %2243 = vmatpush1.msra.mxu0 %v2122
        %2244 = vmatprep.subr.mxu0 0.0
        %2245 = vmatpush1.msra.mxu0 %v2123
        %2246 = vmatprep.subr.mxu0 0.0
        %2247 = vmatpush1.msra.mxu0 %v2124
        %2248 = vmatprep.subr.mxu0 0.0
        %2249 = vmatpush1.msra.mxu0 %v2125
        %2250 = vmatprep.subr.mxu0 0.0
        %2251 = vmatpush1.msra.mxu0 %v2126
        %2252 = vmatprep.subr.mxu0 0.0
        %2253 = vmatpush1.msra.mxu0 %v2127
        %2254 = vmatprep.subr.mxu0 0.0
        %2255 = vmatpush1.msra.mxu0 %v2128
        %2256 = vmatprep.subr.mxu0 0.0
        %2257 = vmatpush1.msra.mxu0 %v2129
        %2258 = vmatprep.subr.mxu0 0.0
        %2259 = vmatpush1.msra.mxu0 %v2130
        %2260 = vmatprep.subr.mxu0 0.0
        %2261 = vmatpush1.msra.mxu0 %v2131
        %2262 = vmatprep.subr.mxu0 0.0
        %2263 = vmatpush1.msra.mxu0 %v2132
        %2264 = vmatprep.subr.mxu0 0.0
        %2265 = vmatpush1.msra.mxu0 %v2133
        %2266 = vmatprep.subr.mxu0 0.0
        %2267 = vmatpush1.msra.mxu0 %v2134
        %2268 = vmatprep.subr.mxu0 0.0
        %2269 = vmatpush1.msra.mxu0 %v2135
        %2270 = vmatprep.subr.mxu0 0.0
        %2271 = vmatpush1.msra.mxu0 %v2136
        %2272 = vmatprep.subr.mxu0 0.0
        %2273 = vmatpush1.msra.mxu0 %v2137
        %2274 = vmatprep.subr.mxu0 0.0
        %2275 = vmatpush1.msra.mxu0 %v2138
        %2276 = vmatprep.subr.mxu0 0.0
        %2277 = vmatpush1.msra.mxu0 %v2139
        %2278 = vmatprep.subr.mxu0 0.0
        %2279 = vmatpush1.msra.mxu0 %v2140
        %2280 = vmatprep.subr.mxu0 0.0
        %2281 = vmatpush1.msra.mxu0 %v2141
        %2282 = vmatprep.subr.mxu0 0.0
        %2283 = vmatpush1.msra.mxu0 %v2142
        %2284 = vmatprep.subr.mxu0 0.0
        %2285 = vmatpush1.msra.mxu0 %v2143
        %2286 = vmatprep.subr.mxu0 0.0
        %2287 = vmatpush1.msra.mxu0 %v2144
        %2288 = vmatprep.subr.mxu0 0.0
        %2289 = vmatpush1.msra.mxu0 %v2145
        %2290 = vmatprep.subr.mxu0 0.0
        %2291 = vmatpush1.msra.mxu0 %v2146
        %2292 = vmatprep.subr.mxu0 0.0
        %2293 = vmatpush1.msra.mxu0 %v2147
        %2294 = vmatprep.subr.mxu0 0.0
        %2295 = vmatpush1.msra.mxu0 %v2148
        %2296 = vmatprep.subr.mxu0 0.0
        %2297 = vmatpush1.msra.mxu0 %v2149
        %2298 = vmatprep.subr.mxu0 0.0
        %2299 = vmatpush1.msra.mxu0 %v2150
        %2300 = vmatprep.subr.mxu0 0.0
        %2301 = vmatpush1.msra.mxu0 %v2151
        %2302 = vmatprep.subr.mxu0 0.0
        %2303 = vmatpush1.msra.mxu0 %v2152
        %2304 = vmatprep.mubr.f32.mxu0 %v2088
        %2305 = vmatmul.mubr.f32.gmra.mrb[0].mxu0 %v2087
        %v2306 = vpop.f32.mrb[0].mxu0
        %v2307 = vadd.f32 %v2237, %v2306
        %v2308 = vpop.f32.mrb[0].mxu0
        %2309 = vdwg.mxu0
        %2310 = vmatprep.subr.mxu0 0.0
        %2311 = vmatpush1.msra.mxu0 %v2153
        %2312 = vmatprep.subr.mxu0 0.0
        %2313 = vmatpush1.msra.mxu0 %v2154
        %2314 = vmatprep.subr.mxu0 0.0
        %2315 = vmatpush1.msra.mxu0 %v2155
        %2316 = vmatprep.subr.mxu0 0.0
        %2317 = vmatpush1.msra.mxu0 %v2156
        %2318 = vmatprep.subr.mxu0 0.0
        %2319 = vmatpush1.msra.mxu0 %v2157
        %2320 = vmatprep.subr.mxu0 0.0
        %2321 = vmatpush1.msra.mxu0 %v2158
        %2322 = vmatprep.subr.mxu0 0.0
        %2323 = vmatpush1.msra.mxu0 %v2159
        %2324 = vmatprep.subr.mxu0 0.0
        %2325 = vmatpush1.msra.mxu0 %v2160
        %2326 = vmatprep.subr.mxu0 0.0
        %2327 = vmatpush1.msra.mxu0 0.0
        %2328 = vmatprep.subr.mxu0 0.0
        %2329 = vmatpush1.msra.mxu0 0.0
        %2330 = vmatprep.subr.mxu0 0.0
        %2331 = vmatpush1.msra.mxu0 0.0
        %2332 = vmatprep.subr.mxu0 0.0
        %2333 = vmatpush1.msra.mxu0 0.0
        %2334 = vmatprep.subr.mxu0 0.0
        %2335 = vmatpush1.msra.mxu0 0.0
        %2336 = vmatprep.subr.mxu0 0.0
        %2337 = vmatpush1.msra.mxu0 0.0
        %2338 = vmatprep.subr.mxu0 0.0
        %2339 = vmatpush1.msra.mxu0 0.0
        %2340 = vmatprep.subr.mxu0 0.0
        %2341 = vmatpush1.msra.mxu0 0.0
        %2342 = vmatprep.subr.mxu0 0.0
        %2343 = vmatpush1.msra.mxu0 0.0
        %2344 = vmatprep.subr.mxu0 0.0
        %2345 = vmatpush1.msra.mxu0 0.0
        %2346 = vmatprep.subr.mxu0 0.0
        %2347 = vmatpush1.msra.mxu0 0.0
        %2348 = vmatprep.subr.mxu0 0.0
        %2349 = vmatpush1.msra.mxu0 0.0
        %2350 = vmatprep.subr.mxu0 0.0
        %2351 = vmatpush1.msra.mxu0 0.0
        %2352 = vmatprep.subr.mxu0 0.0
        %2353 = vmatpush1.msra.mxu0 0.0
        %2354 = vmatprep.subr.mxu0 0.0
        %2355 = vmatpush1.msra.mxu0 0.0
        %2356 = vmatprep.subr.mxu0 0.0
        %2357 = vmatpush1.msra.mxu0 0.0
        %2358 = vmatprep.subr.mxu0 0.0
        %2359 = vmatpush1.msra.mxu0 0.0
        %2360 = vmatprep.subr.mxu0 0.0
        %2361 = vmatpush1.msra.mxu0 0.0
        %2362 = vmatprep.subr.mxu0 0.0
        %2363 = vmatpush1.msra.mxu0 0.0
        %2364 = vmatprep.subr.mxu0 0.0
        %2365 = vmatpush1.msra.mxu0 0.0
        %2366 = vmatprep.subr.mxu0 0.0
        %2367 = vmatpush1.msra.mxu0 0.0
        %2368 = vmatprep.subr.mxu0 0.0
        %2369 = vmatpush1.msra.mxu0 0.0
        %2370 = vmatprep.subr.mxu0 0.0
        %2371 = vmatpush1.msra.mxu0 0.0
        %2372 = vmatprep.subr.mxu0 0.0
        %2373 = vmatpush1.msra.mxu0 0.0
        %2374 = vmatprep.mubr.f32.mxu0 0.0
        %2375 = vmatmul.mubr.f32.gmra.mrb[0].mxu0 %v2168
        %v2376 = vpop.f32.mrb[0].mxu0
        %v2377 = vadd.f32 %v2307, %v2376
        %v2378 = vpop.f32.mrb[0].mxu0
        %2379 = vdwg.mxu0
        %v2380 = vmax.f32 %v2377, 0.0
        %v2382 = vrot.slane %v2380, 2
        %v2384 = vsel %vm861, %v2380, %v2382
        %vm2385 = vcmask 519168
        %2386 = vst.msk [vmem:[%s379] sm:$0xf] %vm2385, %v2384
        %s2387 = sand.u32 %s269, 1
        %s2388 = scalar_lea.sflag [#allocation3], %s2387
        %s2389 = sand.u32 %s269, 1
        %s2390 = smul.addr %s2389, 4
        %s2391 = scalar_lea.vmem [#allocation2], %s2390
        // Predicated region
        $region65: #{embedding_forward.1} parent=63 // pred_check
          %p2392 = pneg %p279
        $region66: #{embedding_forward.1} parent=63 // pred_check_branch
          %2394 = sbr.rel (%p2392) target = $region68
        $region67: #{embedding_forward.1} parent=63 // pred_region
          %s2396 = ssub.s32 64, 64
          %2397 = vsyncadd %s2388, %s2396
          %s2398 = smul.addr %s25, 64
          %s2399 = scalar_lea.hbm %s11, %s2398
          %s2401 = sshll.u32 %s2391, 4
          %s2402 = int_to_ptr.vmem [resolvable:$true] %s2401
          %2404 = dma.vmem_to_hbm [thread:$0]  %s2402, 64, %s2399, %s2388
        $region68: #{embedding_forward.1} parent=63 // pred_fallthru
          _
      $region64: #{embedding_forward.1} parent=5 // pred_fallthru
        _
      %p2405 = scmp.le.s32.totalorder 2, %s20
      // Predicated region
      $region69: #{embedding_forward.1} parent=5 // pred_check
        %p2406 = pneg %p2405
      $region70: #{embedding_forward.1} parent=5 // pred_check_branch
        %2408 = sbr.rel (%p2406) target = $region72
      $region71: #{embedding_forward.1} parent=5 // pred_region
        %s2409 = ssub.s32 %s20, 2
        // Predicated region
        $region73: #{embedding_forward.1} parent=71 // pred_check
          %p2410 = pneg %p285
        $region74: #{embedding_forward.1} parent=71 // pred_check_branch
          %2412 = sbr.rel (%p2410) target = $region76
        $region75: #{embedding_forward.1} parent=71 // pred_region
          %s2413 = sand.u32 %s270, 1
          %s2414 = scalar_lea.sflag [#allocation3], %s2413
          %s2415 = sand.u32 %s270, 1
          %s2416 = smul.addr %s2415, 4
          %s2417 = scalar_lea.vmem [#allocation2], %s2416
          %2418 = dma.done %s2414, 64
        $region76: #{embedding_forward.1} parent=71 // pred_fallthru
          _
      $region72: #{embedding_forward.1} parent=5 // pred_fallthru
        _
    $region6: #{embedding_forward.1} parent=1 // loop_footer
      %s24 = sadd.s32 1, %s20
    $region7: #{embedding_forward.1} parent=1 // loop_footer_branch
      %19 = sbr.rel target = $region3
    $region8: #{embedding_forward.1} parent=1 // loop_exit
      _
    %2419 = vsyncpa [#allocation3], 1
    %s2420 = scalar_lea.sflag [#allocation3], 1
    %2421 = vsyncpa %s2420, 1

</llo_original>
